<compile_context>
chip_gen: v6e
topology: v6e:2x2x1
jax: 0.10.0
libtpu: 0.0.40
codegen_flags: <defaults>
</compile_context>

<pallas_src>
import functools
import math

import jax
import jax.numpy as jnp
from jax.experimental import pallas as pl
from jax.experimental.pallas import tpu as pltpu

EPS = 1e-5  # nn.LayerNorm default


def transformer_block_kernel(x_ref, xh_ref, mask_ref,
                             wfc_ref, bfc_ref,
                             g1_ref, beta1_ref,
                             w1_ref, b1_ref,
                             w2_ref, b2_ref,
                             g2_ref, beta2_ref,
                             o_ref,
                             *, embed_size):
    f32 = jnp.float32
    bf16 = jnp.bfloat16

    x = x_ref[0]            # (L, E)  f32, residual stream (= value = key = query)
    xh = xh_ref[0]          # (heads, L, Dh)  bf16, pre-split per-head Q = K = V
    mask = mask_ref[...]    # (1, 1, L) key-padding mask, broadcasts over heads & queries

    scale = 1.0 / math.sqrt(embed_size)

    # ---- SelfAttention: heads batched on the leading dim, no transpose/concat ----
    # energy[h, q, k] = sum_d xh[h, q, d] * xh[h, k, d]
    energy = jax.lax.dot_general(xh, xh,
                                 (((2,), (2,)), ((0,), (0,))),
                                 preferred_element_type=f32)          # (heads, L, L)
    energy = jnp.where(mask == 0.0, -1e20, energy)                    # masked_fill BEFORE scaling
    logits = energy * scale
    logits = logits - jnp.max(logits, axis=-1, keepdims=True)         # stable softmax
    p = jnp.exp(logits)
    attn = p * pl.reciprocal(jnp.sum(p, axis=-1, keepdims=True), approx=True)

    # context[h, q, d] = sum_k attn[h, q, k] * xh[h, k, d]
    ctx = jax.lax.dot_general(attn.astype(bf16), xh,
                              (((2,), (1,)), ((0,), (0,))),
                              preferred_element_type=f32)             # (heads, L, Dh)

    # fc_out decomposed per head: concat_h(ctx_h) @ Wfc == sum_h ctx_h @ Wfc[h]
    fc_part = jax.lax.dot_general(ctx.astype(bf16), wfc_ref[...],
                                  (((2,), (1,)), ((0,), (0,))),
                                  preferred_element_type=f32)         # (heads, L, E)
    att = jnp.sum(fc_part, axis=0) + bfc_ref[...]                     # (L, E)

    # ---- residual + LayerNorm 1 (single-pass mean / mean-of-squares) ----
    h1 = att + x
    mu1 = jnp.mean(h1, axis=-1, keepdims=True)
    var1 = jnp.mean(h1 * h1, axis=-1, keepdims=True) - mu1 * mu1
    x1 = (h1 - mu1) * jax.lax.rsqrt(var1 + EPS) * g1_ref[...] + beta1_ref[...]

    # ---- feed forward: Linear -> ReLU -> Linear (bf16 operands, f32 accumulate) ----
    ff = jnp.dot(x1.astype(bf16), w1_ref[...], preferred_element_type=f32) + b1_ref[...]
    ff = jnp.maximum(ff, 0.0)
    ff = jnp.dot(ff.astype(bf16), w2_ref[...], preferred_element_type=f32) + b2_ref[...]

    # ---- residual + LayerNorm 2 ----
    h2 = ff + x1
    mu2 = jnp.mean(h2, axis=-1, keepdims=True)
    var2 = jnp.mean(h2 * h2, axis=-1, keepdims=True) - mu2 * mu2
    out = (h2 - mu2) * jax.lax.rsqrt(var2 + EPS) * g2_ref[...] + beta2_ref[...]

    o_ref[0] = out
    # TODO(synk): dropout layers are identity here (eval mode / p=0); no RNG-based dropout.
    # TODO(synk): for production shapes (E>=1024, long L) add flash-style L tiling and
    # single-buffered / K-tiled weight specs so f32 weights don't exceed VMEM limits.


def transformer_block(x, mask, p, *, heads):
    N, L, E = x.shape
    head_dim = E // heads
    hidden = p["w1"].shape[1]

    # Wrapper-side layout plumbing (plain XLA, fused with surrounding ops):
    #   per-head Q=K=V view and per-head-sliced fc_out weight, matmul weights in bf16.
    x_heads = x.reshape(N, L, heads, head_dim).transpose(0, 2, 1, 3).astype(jnp.bfloat16)
    wfc_h = p["wfc"].reshape(heads, head_dim, E).astype(jnp.bfloat16)
    w1_bf = p["w1"].astype(jnp.bfloat16)
    w2_bf = p["w2"].astype(jnp.bfloat16)

    def full(shape):
        nd = len(shape)
        return pl.BlockSpec(shape, lambda n, _nd=nd: (0,) * _nd)

    kernel = functools.partial(transformer_block_kernel, embed_size=E)
    return pl.pallas_call(
        kernel,
        out_shape=jax.ShapeDtypeStruct((N, L, E), jnp.float32),
        grid=(N,),
        in_specs=[
            pl.BlockSpec((1, L, E), lambda n: (n, 0, 0)),                 # x (residual stream)
            pl.BlockSpec((1, heads, L, head_dim), lambda n: (n, 0, 0, 0)),  # per-head Q=K=V
            pl.BlockSpec((1, 1, L), lambda n: (n, 0, 0)),                 # key-padding mask
            full((heads, head_dim, E)), full((1, E)),                     # fc_out W (per head), b
            full((1, E)), full((1, E)),                                   # norm1 gamma, beta
            full((E, hidden)), full((1, hidden)),                         # ff linear1 W, b
            full((hidden, E)), full((1, E)),                              # ff linear2 W, b
            full((1, E)), full((1, E)),                                   # norm2 gamma, beta
        ],
        out_specs=pl.BlockSpec((1, L, E), lambda n: (n, 0, 0)),
        compiler_params=pltpu.CompilerParams(
            dimension_semantics=("parallel",)),                            # batch is independent
    )(x, x_heads, mask,
      wfc_h, p["bfc"],
      p["g1"], p["beta1"],
      w1_bf, p["b1"],
      w2_bf, p["b2"],
      p["g2"], p["beta2"])


def encoder_forward(tokens, mask, params, *, heads):
    # Embedding lookups + positional add are glue (plain JAX); the hot path
    # (attention / layernorm / MLP) runs inside the Pallas kernel per layer.
    N, L = tokens.shape
    word = jnp.take(params["word_embedding"], tokens, axis=0)             # (N, L, E)
    pos = jnp.take(params["position_embedding"], jnp.arange(L), axis=0)   # (L, E)
    out = word + pos[None, :, :]
    for layer_p in params["layers"]:
        out = transformer_block(out, mask, layer_p, heads=heads)
    return out


def init_params(key, *, vocab, max_length, embed_size, num_layers, forward_expansion):
    hidden = forward_expansion * embed_size
    keys = jax.random.split(key, 2 + num_layers * 4)

    def nrm(k, shape, scale=0.05):
        return (scale * jax.random.normal(k, shape)).astype(jnp.float32)

    params = {
        "word_embedding": nrm(keys[0], (vocab, embed_size), 0.1),
        "position_embedding": nrm(keys[1], (max_length, embed_size), 0.1),
        "layers": [],
    }
    for l in range(num_layers):
        k0, k1, k2, k3 = keys[2 + 4 * l: 6 + 4 * l]
        params["layers"].append({
            "wfc": nrm(k0, (embed_size, embed_size)),
            "bfc": jnp.zeros((1, embed_size), jnp.float32),
            "g1": jnp.ones((1, embed_size), jnp.float32),
            "beta1": jnp.zeros((1, embed_size), jnp.float32),
            "w1": nrm(k1, (embed_size, hidden)),
            "b1": nrm(k2, (1, hidden), 0.01),
            "w2": nrm(k3, (hidden, embed_size)),
            "b2": jnp.zeros((1, embed_size), jnp.float32),
            "g2": jnp.ones((1, embed_size), jnp.float32),
            "beta2": jnp.zeros((1, embed_size), jnp.float32),
        })
    return params


if __name__ == "__main__":
    # Small, deterministic config consistent with the module's forward.
    # E = 128 keeps all activations / stores lane-dense (full 128-lane vst).
    N, L = 2, 8
    vocab, max_length = 50, 16
    embed_size, heads, num_layers, forward_expansion = 128, 4, 2, 4

    key = jax.random.PRNGKey(0)
    kp, kt = jax.random.split(key)
    params = init_params(kp, vocab=vocab, max_length=max_length,
                         embed_size=embed_size, num_layers=num_layers,
                         forward_expansion=forward_expansion)

    tokens = jax.random.randint(kt, (N, L), 0, vocab, dtype=jnp.int32)
    # Key-padding mask (N, 1, L): 1 = attend, 0 = masked (-1e20 fill).
    mask = jnp.ones((N, 1, L), jnp.float32).at[1, 0, L - 2:].set(0.0)

    out = encoder_forward(tokens, mask, params, heads=heads)
    out = jax.block_until_ready(out)
    assert out.shape == (N, L, embed_size)
    assert bool(jnp.all(jnp.isfinite(out)))
    print("KERNEL_OK")
</pallas_src>

<mosaic_0001>
module attributes {stable_mosaic.version = 11 : i64} {
  func.func @transformer_block_kernel(%arg0: i32, %arg1: memref<1x8x128xf32, #tpu.memory_space<vmem>>, %arg2: memref<1x4x8x32xbf16, #tpu.memory_space<vmem>>, %arg3: memref<1x1x8xf32, #tpu.memory_space<vmem>>, %arg4: memref<4x32x128xbf16, #tpu.memory_space<vmem>>, %arg5: memref<1x128xf32, #tpu.memory_space<vmem>>, %arg6: memref<1x128xf32, #tpu.memory_space<vmem>>, %arg7: memref<1x128xf32, #tpu.memory_space<vmem>>, %arg8: memref<128x512xbf16, #tpu.memory_space<vmem>>, %arg9: memref<1x512xf32, #tpu.memory_space<vmem>>, %arg10: memref<512x128xbf16, #tpu.memory_space<vmem>>, %arg11: memref<1x128xf32, #tpu.memory_space<vmem>>, %arg12: memref<1x128xf32, #tpu.memory_space<vmem>>, %arg13: memref<1x128xf32, #tpu.memory_space<vmem>>, %arg14: memref<1x8x128xf32, #tpu.memory_space<vmem>>) attributes {dimension_semantics = [#tpu.dimension_semantics<parallel>], iteration_bounds = array<i64: 2>, scalar_prefetch = 0 : i64, scratch_operands = 0 : i64, tpu.core_type = #tpu.core_type<tc>, window_params = [{transform_indices = @transform_0, window_bounds = array<i64: 1, 8, 128>}, {transform_indices = @transform_1, window_bounds = array<i64: 1, 4, 8, 32>}, {transform_indices = @transform_2, window_bounds = array<i64: 1, 1, 8>}, {pipeline_mode = #tpu.pipeline_mode<synchronous>, transform_indices = @transform_3, window_bounds = array<i64: 4, 32, 128>}, {pipeline_mode = #tpu.pipeline_mode<synchronous>, transform_indices = @transform_4, window_bounds = array<i64: 1, 128>}, {pipeline_mode = #tpu.pipeline_mode<synchronous>, transform_indices = @transform_5, window_bounds = array<i64: 1, 128>}, {pipeline_mode = #tpu.pipeline_mode<synchronous>, transform_indices = @transform_6, window_bounds = array<i64: 1, 128>}, {pipeline_mode = #tpu.pipeline_mode<synchronous>, transform_indices = @transform_7, window_bounds = array<i64: 128, 512>}, {pipeline_mode = #tpu.pipeline_mode<synchronous>, transform_indices = @transform_8, window_bounds = array<i64: 1, 512>}, {pipeline_mode = #tpu.pipeline_mode<synchronous>, transform_indices = @transform_9, window_bounds = array<i64: 512, 128>}, {pipeline_mode = #tpu.pipeline_mode<synchronous>, transform_indices = @transform_10, window_bounds = array<i64: 1, 128>}, {pipeline_mode = #tpu.pipeline_mode<synchronous>, transform_indices = @transform_11, window_bounds = array<i64: 1, 128>}, {pipeline_mode = #tpu.pipeline_mode<synchronous>, transform_indices = @transform_12, window_bounds = array<i64: 1, 128>}, {transform_indices = @transform_13, window_bounds = array<i64: 1, 8, 128>}]} {
    %c0 = arith.constant 0 : index
    %c0_0 = arith.constant 0 : index
    %c0_1 = arith.constant 0 : index
    %0 = vector.load %arg1[%c0, %c0_0, %c0_1] : memref<1x8x128xf32, #tpu.memory_space<vmem>>, vector<1x8x128xf32>
    %1 = vector.shape_cast %0 : vector<1x8x128xf32> to vector<8x128xf32>
    %c0_2 = arith.constant 0 : index
    %c0_3 = arith.constant 0 : index
    %c0_4 = arith.constant 0 : index
    %c0_5 = arith.constant 0 : index
    %2 = vector.load %arg2[%c0_2, %c0_3, %c0_4, %c0_5] : memref<1x4x8x32xbf16, #tpu.memory_space<vmem>>, vector<1x4x8x32xbf16>
    %3 = vector.shape_cast %2 : vector<1x4x8x32xbf16> to vector<4x8x32xbf16>
    %c0_6 = arith.constant 0 : index
    %c0_7 = arith.constant 0 : index
    %c0_8 = arith.constant 0 : index
    %4 = vector.load %arg3[%c0_6, %c0_7, %c0_8] : memref<1x1x8xf32, #tpu.memory_space<vmem>>, vector<1x1x8xf32>
    %cst = arith.constant dense<0.000000e+00> : vector<4x8x8xf32>
    %5 = tpu.matmul %3, %3, %cst {dimension_numbers = #tpu.dot_dimension_numbers<[2], [2], [1], [1], [0, 0, 0, 1, 1, 1], [0], [0]>} : vector<4x8x32xbf16>, vector<4x8x32xbf16>, vector<4x8x8xf32> -> vector<4x8x8xf32>
    %cst_9 = arith.constant 0.000000e+00 : f32
    %6 = vector.broadcast %cst_9 : f32 to vector<1x1x8xf32>
    %7 = arith.cmpf oeq, %4, %6 : vector<1x1x8xf32>
    %cst_10 = arith.constant -1.000000e+20 : f32
    %8 = vector.shape_cast %7 : vector<1x1x8xi1> to vector<1x1x8xi1>
    %9 = vector.broadcast %8 : vector<1x1x8xi1> to vector<4x8x8xi1>
    %10 = vector.broadcast %cst_10 : f32 to vector<4x8x8xf32>
    %11 = arith.select %9, %10, %5 : vector<4x8x8xi1>, vector<4x8x8xf32>
    %cst_11 = arith.constant 0.0883883461 : f32
    %12 = vector.broadcast %cst_11 : f32 to vector<4x8x8xf32>
    %13 = arith.mulf %11, %12 : vector<4x8x8xf32>
    %cst_12 = arith.constant dense<0xFF800000> : vector<4x8xf32>
    %14 = vector.multi_reduction <maximumf>, %13, %cst_12 [2] : vector<4x8x8xf32> to vector<4x8xf32>
    %15 = vector.shape_cast %14 : vector<4x8xf32> to vector<4x8x1xf32>
    %16 = vector.broadcast %15 : vector<4x8x1xf32> to vector<4x8x8xf32>
    %17 = arith.subf %13, %16 : vector<4x8x8xf32>
    %18 = math.exp %17 : vector<4x8x8xf32>
    %cst_13 = arith.constant dense<0.000000e+00> : vector<4x8xf32>
    %19 = vector.multi_reduction <add>, %18, %cst_13 [2] : vector<4x8x8xf32> to vector<4x8xf32>
    %20 = vector.shape_cast %19 : vector<4x8xf32> to vector<4x8x1xf32>
    %21 = tpu.reciprocal %20 {approx = true} : vector<4x8x1xf32> -> vector<4x8x1xf32>
    %22 = vector.broadcast %21 : vector<4x8x1xf32> to vector<4x8x8xf32>
    %23 = arith.mulf %18, %22 : vector<4x8x8xf32>
    %24 = arith.truncf %23 : vector<4x8x8xf32> to vector<4x8x8xbf16>
    %cst_14 = arith.constant dense<0.000000e+00> : vector<4x8x32xf32>
    %25 = tpu.matmul %24, %3, %cst_14 {dimension_numbers = #tpu.dot_dimension_numbers<[2], [1], [1], [2], [0, 0, 0, 1, 1, 2], [0], [0]>} : vector<4x8x8xbf16>, vector<4x8x32xbf16>, vector<4x8x32xf32> -> vector<4x8x32xf32>
    %26 = arith.truncf %25 : vector<4x8x32xf32> to vector<4x8x32xbf16>
    %c0_15 = arith.constant 0 : index
    %c0_16 = arith.constant 0 : index
    %c0_17 = arith.constant 0 : index
    %27 = vector.load %arg4[%c0_15, %c0_16, %c0_17] : memref<4x32x128xbf16, #tpu.memory_space<vmem>>, vector<4x32x128xbf16>
    %cst_18 = arith.constant dense<0.000000e+00> : vector<4x8x128xf32>
    %28 = tpu.matmul %26, %27, %cst_18 {dimension_numbers = #tpu.dot_dimension_numbers<[2], [1], [1], [2], [0, 0, 0, 1, 1, 2], [0], [0]>} : vector<4x8x32xbf16>, vector<4x32x128xbf16>, vector<4x8x128xf32> -> vector<4x8x128xf32>
    %cst_19 = arith.constant dense<0.000000e+00> : vector<8x128xf32>
    %29 = vector.multi_reduction <add>, %28, %cst_19 [0] : vector<4x8x128xf32> to vector<8x128xf32>
    %c0_20 = arith.constant 0 : index
    %c0_21 = arith.constant 0 : index
    %30 = vector.load %arg5[%c0_20, %c0_21] : memref<1x128xf32, #tpu.memory_space<vmem>>, vector<1x128xf32>
    %31 = vector.broadcast %30 : vector<1x128xf32> to vector<8x128xf32>
    %32 = arith.addf %29, %31 : vector<8x128xf32>
    %33 = arith.addf %32, %1 : vector<8x128xf32>
    %cst_22 = arith.constant dense<0.000000e+00> : vector<8xf32>
    %34 = vector.multi_reduction <add>, %33, %cst_22 [1] : vector<8x128xf32> to vector<8xf32>
    %35 = vector.shape_cast %34 : vector<8xf32> to vector<8x1xf32>
    %cst_23 = arith.constant 1.280000e+02 : f32
    %36 = vector.broadcast %cst_23 : f32 to vector<8x1xf32>
    %37 = arith.divf %35, %36 : vector<8x1xf32>
    %38 = arith.mulf %33, %33 : vector<8x128xf32>
    %cst_24 = arith.constant dense<0.000000e+00> : vector<8xf32>
    %39 = vector.multi_reduction <add>, %38, %cst_24 [1] : vector<8x128xf32> to vector<8xf32>
    %40 = vector.shape_cast %39 : vector<8xf32> to vector<8x1xf32>
    %cst_25 = arith.constant 1.280000e+02 : f32
    %41 = vector.broadcast %cst_25 : f32 to vector<8x1xf32>
    %42 = arith.divf %40, %41 : vector<8x1xf32>
    %43 = arith.mulf %37, %37 : vector<8x1xf32>
    %44 = arith.subf %42, %43 : vector<8x1xf32>
    %45 = vector.broadcast %37 : vector<8x1xf32> to vector<8x128xf32>
    %46 = arith.subf %33, %45 : vector<8x128xf32>
    %cst_26 = arith.constant 9.99999974E-6 : f32
    %47 = vector.broadcast %cst_26 : f32 to vector<8x1xf32>
    %48 = arith.addf %44, %47 : vector<8x1xf32>
    %49 = math.rsqrt %48 : vector<8x1xf32>
    %50 = vector.broadcast %49 : vector<8x1xf32> to vector<8x128xf32>
    %51 = arith.mulf %46, %50 : vector<8x128xf32>
    %c0_27 = arith.constant 0 : index
    %c0_28 = arith.constant 0 : index
    %52 = vector.load %arg6[%c0_27, %c0_28] : memref<1x128xf32, #tpu.memory_space<vmem>>, vector<1x128xf32>
    %53 = vector.broadcast %52 : vector<1x128xf32> to vector<8x128xf32>
    %54 = arith.mulf %51, %53 : vector<8x128xf32>
    %c0_29 = arith.constant 0 : index
    %c0_30 = arith.constant 0 : index
    %55 = vector.load %arg7[%c0_29, %c0_30] : memref<1x128xf32, #tpu.memory_space<vmem>>, vector<1x128xf32>
    %56 = vector.broadcast %55 : vector<1x128xf32> to vector<8x128xf32>
    %57 = arith.addf %54, %56 : vector<8x128xf32>
    %58 = arith.truncf %57 : vector<8x128xf32> to vector<8x128xbf16>
    %c0_31 = arith.constant 0 : index
    %c0_32 = arith.constant 0 : index
    %59 = vector.load %arg8[%c0_31, %c0_32] : memref<128x512xbf16, #tpu.memory_space<vmem>>, vector<128x512xbf16>
    %cst_33 = arith.constant dense<0.000000e+00> : vector<8x512xf32>
    %60 = tpu.matmul %58, %59, %cst_33 {dimension_numbers = #tpu.dot_dimension_numbers<[1], [0], [0], [1], [0, 0, 1, 1], [], []>} : vector<8x128xbf16>, vector<128x512xbf16>, vector<8x512xf32> -> vector<8x512xf32>
    %c0_34 = arith.constant 0 : index
    %c0_35 = arith.constant 0 : index
    %61 = vector.load %arg9[%c0_34, %c0_35] : memref<1x512xf32, #tpu.memory_space<vmem>>, vector<1x512xf32>
    %62 = vector.broadcast %61 : vector<1x512xf32> to vector<8x512xf32>
    %63 = arith.addf %60, %62 : vector<8x512xf32>
    %cst_36 = arith.constant 0.000000e+00 : f32
    %64 = vector.broadcast %cst_36 : f32 to vector<8x512xf32>
    %65 = arith.maximumf %63, %64 : vector<8x512xf32>
    %66 = arith.truncf %65 : vector<8x512xf32> to vector<8x512xbf16>
    %c0_37 = arith.constant 0 : index
    %c0_38 = arith.constant 0 : index
    %67 = vector.load %arg10[%c0_37, %c0_38] : memref<512x128xbf16, #tpu.memory_space<vmem>>, vector<512x128xbf16>
    %cst_39 = arith.constant dense<0.000000e+00> : vector<8x128xf32>
    %68 = tpu.matmul %66, %67, %cst_39 {dimension_numbers = #tpu.dot_dimension_numbers<[1], [0], [0], [1], [0, 0, 1, 1], [], []>} : vector<8x512xbf16>, vector<512x128xbf16>, vector<8x128xf32> -> vector<8x128xf32>
    %c0_40 = arith.constant 0 : index
    %c0_41 = arith.constant 0 : index
    %69 = vector.load %arg11[%c0_40, %c0_41] : memref<1x128xf32, #tpu.memory_space<vmem>>, vector<1x128xf32>
    %70 = vector.broadcast %69 : vector<1x128xf32> to vector<8x128xf32>
    %71 = arith.addf %68, %70 : vector<8x128xf32>
    %72 = arith.addf %71, %57 : vector<8x128xf32>
    %cst_42 = arith.constant dense<0.000000e+00> : vector<8xf32>
    %73 = vector.multi_reduction <add>, %72, %cst_42 [1] : vector<8x128xf32> to vector<8xf32>
    %74 = vector.shape_cast %73 : vector<8xf32> to vector<8x1xf32>
    %cst_43 = arith.constant 1.280000e+02 : f32
    %75 = vector.broadcast %cst_43 : f32 to vector<8x1xf32>
    %76 = arith.divf %74, %75 : vector<8x1xf32>
    %77 = arith.mulf %72, %72 : vector<8x128xf32>
    %cst_44 = arith.constant dense<0.000000e+00> : vector<8xf32>
    %78 = vector.multi_reduction <add>, %77, %cst_44 [1] : vector<8x128xf32> to vector<8xf32>
    %79 = vector.shape_cast %78 : vector<8xf32> to vector<8x1xf32>
    %cst_45 = arith.constant 1.280000e+02 : f32
    %80 = vector.broadcast %cst_45 : f32 to vector<8x1xf32>
    %81 = arith.divf %79, %80 : vector<8x1xf32>
    %82 = arith.mulf %76, %76 : vector<8x1xf32>
    %83 = arith.subf %81, %82 : vector<8x1xf32>
    %84 = vector.broadcast %76 : vector<8x1xf32> to vector<8x128xf32>
    %85 = arith.subf %72, %84 : vector<8x128xf32>
    %cst_46 = arith.constant 9.99999974E-6 : f32
    %86 = vector.broadcast %cst_46 : f32 to vector<8x1xf32>
    %87 = arith.addf %83, %86 : vector<8x1xf32>
    %88 = math.rsqrt %87 : vector<8x1xf32>
    %89 = vector.broadcast %88 : vector<8x1xf32> to vector<8x128xf32>
    %90 = arith.mulf %85, %89 : vector<8x128xf32>
    %c0_47 = arith.constant 0 : index
    %c0_48 = arith.constant 0 : index
    %91 = vector.load %arg12[%c0_47, %c0_48] : memref<1x128xf32, #tpu.memory_space<vmem>>, vector<1x128xf32>
    %92 = vector.broadcast %91 : vector<1x128xf32> to vector<8x128xf32>
    %93 = arith.mulf %90, %92 : vector<8x128xf32>
    %c0_49 = arith.constant 0 : index
    %c0_50 = arith.constant 0 : index
    %94 = vector.load %arg13[%c0_49, %c0_50] : memref<1x128xf32, #tpu.memory_space<vmem>>, vector<1x128xf32>
    %95 = vector.broadcast %94 : vector<1x128xf32> to vector<8x128xf32>
    %96 = arith.addf %93, %95 : vector<8x128xf32>
    %c0_51 = arith.constant 0 : index
    %c0_52 = arith.constant 0 : index
    %c0_53 = arith.constant 0 : index
    %97 = vector.load %arg14[%c0_51, %c0_52, %c0_53] : memref<1x8x128xf32, #tpu.memory_space<vmem>>, vector<1x8x128xf32>
    %98 = vector.shape_cast %97 : vector<1x8x128xf32> to vector<8x128xf32>
    %99 = vector.shape_cast %96 : vector<8x128xf32> to vector<1x8x128xf32>
    tpu.vector_store %arg14[%c0_51, %c0_52, %c0_53], %99 {strides = array<i32>} : memref<1x8x128xf32, #tpu.memory_space<vmem>>, vector<1x8x128xf32>,
    return
  }
  func.func @transform_0(%arg0: i32) -> (i32, i32, i32) {
    %c0_i32 = arith.constant 0 : i32
    %c0_i32_0 = arith.constant 0 : i32
    %c0_i32_1 = arith.constant 0 : i32
    return %arg0, %c0_i32, %c0_i32_0 : i32, i32, i32
  }
  func.func @transform_1(%arg0: i32) -> (i32, i32, i32, i32) {
    %c0_i32 = arith.constant 0 : i32
    %c0_i32_0 = arith.constant 0 : i32
    %c0_i32_1 = arith.constant 0 : i32
    %c0_i32_2 = arith.constant 0 : i32
    return %arg0, %c0_i32, %c0_i32_0, %c0_i32_1 : i32, i32, i32, i32
  }
  func.func @transform_2(%arg0: i32) -> (i32, i32, i32) {
    %c0_i32 = arith.constant 0 : i32
    %c0_i32_0 = arith.constant 0 : i32
    %c0_i32_1 = arith.constant 0 : i32
    return %arg0, %c0_i32, %c0_i32_0 : i32, i32, i32
  }
  func.func @transform_3(%arg0: i32) -> (i32, i32, i32) {
    %c0_i32 = arith.constant 0 : i32
    %c0_i32_0 = arith.constant 0 : i32
    %c0_i32_1 = arith.constant 0 : i32
    %c0_i32_2 = arith.constant 0 : i32
    return %c0_i32, %c0_i32_0, %c0_i32_1 : i32, i32, i32
  }
  func.func @transform_4(%arg0: i32) -> (i32, i32) {
    %c0_i32 = arith.constant 0 : i32
    %c0_i32_0 = arith.constant 0 : i32
    %c0_i32_1 = arith.constant 0 : i32
    return %c0_i32, %c0_i32_0 : i32, i32
  }
  func.func @transform_5(%arg0: i32) -> (i32, i32) {
    %c0_i32 = arith.constant 0 : i32
    %c0_i32_0 = arith.constant 0 : i32
    %c0_i32_1 = arith.constant 0 : i32
    return %c0_i32, %c0_i32_0 : i32, i32
  }
  func.func @transform_6(%arg0: i32) -> (i32, i32) {
    %c0_i32 = arith.constant 0 : i32
    %c0_i32_0 = arith.constant 0 : i32
    %c0_i32_1 = arith.constant 0 : i32
    return %c0_i32, %c0_i32_0 : i32, i32
  }
  func.func @transform_7(%arg0: i32) -> (i32, i32) {
    %c0_i32 = arith.constant 0 : i32
    %c0_i32_0 = arith.constant 0 : i32
    %c0_i32_1 = arith.constant 0 : i32
    return %c0_i32, %c0_i32_0 : i32, i32
  }
  func.func @transform_8(%arg0: i32) -> (i32, i32) {
    %c0_i32 = arith.constant 0 : i32
    %c0_i32_0 = arith.constant 0 : i32
    %c0_i32_1 = arith.constant 0 : i32
    return %c0_i32, %c0_i32_0 : i32, i32
  }
  func.func @transform_9(%arg0: i32) -> (i32, i32) {
    %c0_i32 = arith.constant 0 : i32
    %c0_i32_0 = arith.constant 0 : i32
    %c0_i32_1 = arith.constant 0 : i32
    return %c0_i32, %c0_i32_0 : i32, i32
  }
  func.func @transform_10(%arg0: i32) -> (i32, i32) {
    %c0_i32 = arith.constant 0 : i32
    %c0_i32_0 = arith.constant 0 : i32
    %c0_i32_1 = arith.constant 0 : i32
    return %c0_i32, %c0_i32_0 : i32, i32
  }
  func.func @transform_11(%arg0: i32) -> (i32, i32) {
    %c0_i32 = arith.constant 0 : i32
    %c0_i32_0 = arith.constant 0 : i32
    %c0_i32_1 = arith.constant 0 : i32
    return %c0_i32, %c0_i32_0 : i32, i32
  }
  func.func @transform_12(%arg0: i32) -> (i32, i32) {
    %c0_i32 = arith.constant 0 : i32
    %c0_i32_0 = arith.constant 0 : i32
    %c0_i32_1 = arith.constant 0 : i32
    return %c0_i32, %c0_i32_0 : i32, i32
  }
  func.func @transform_13(%arg0: i32) -> (i32, i32, i32) {
    %c0_i32 = arith.constant 0 : i32
    %c0_i32_0 = arith.constant 0 : i32
    %c0_i32_1 = arith.constant 0 : i32
    return %arg0, %c0_i32, %c0_i32_0 : i32, i32, i32
  }
}

</mosaic_0001>

<llo_original>
// kernel: tpu_custom_call.1
$region0: #{tpu_custom_call.1}
  #allocation0 [shape = 'u32[]', space=smem, size = 0x4, offset = 0x4, fixed_abs, tag = 'smem constant byte address 0x4 - core index']
  #allocation1 [shape = 'u32[144,128]{1,0:T(1,128)}', space=vmem, size = 0x12000, scoped, tag = 'internal scratch']
  %s0 = inlined_call_operand.hbm [shape: f32[2,8,128], index: 0, kind: input, shape index: {}]
  %s1 = inlined_call_operand.hbm [shape: bf16[2,4,8,32], index: 1, kind: input, shape index: {}]
  %s2 = inlined_call_operand.vmem [shape: f32[2,1,8], index: 2, kind: input, shape index: {}]
  %s3 = inlined_call_operand.hbm [shape: bf16[4,32,128], index: 3, kind: input, shape index: {}]
  %s4 = inlined_call_operand.vmem [shape: f32[1,128], index: 4, kind: input, shape index: {}]
  %s5 = inlined_call_operand.vmem [shape: f32[1,128], index: 5, kind: input, shape index: {}]
  %s6 = inlined_call_operand.vmem [shape: f32[1,128], index: 6, kind: input, shape index: {}]
  %s7 = inlined_call_operand.hbm [shape: bf16[128,512], index: 7, kind: input, shape index: {}]
  %s8 = inlined_call_operand.vmem [shape: f32[1,512], index: 8, kind: input, shape index: {}]
  %s9 = inlined_call_operand.hbm [shape: bf16[512,128], index: 9, kind: input, shape index: {}]
  %s10 = inlined_call_operand.vmem [shape: f32[1,128], index: 10, kind: input, shape index: {}]
  %s11 = inlined_call_operand.vmem [shape: f32[1,128], index: 11, kind: input, shape index: {}]
  %s12 = inlined_call_operand.vmem [shape: f32[1,128], index: 12, kind: input, shape index: {}]
  %s13 = inlined_call_operand.hbm [shape: f32[2,8,128], index: 13, kind: output, shape index: {}]
  %s14 = sld [smem:[#allocation0]]
  $region105: #{tpu_custom_call.1} parent=0
    _
  %s16 = ssub.s32 1, %s14
  %s17 = scalar_select 0, %s16, %s14
  $region1: #{tpu_custom_call.1} parent=0
    #allocation2 [shape = 'u8[8192]{0}', space=vmem, size = 0x2000, scoped, tag = 'input window, operand 0']
    #allocation3 [shape = 's32[2]{0}', space=sflag, size = 0x8, scoped, tag = 'scoped memory for tpu_custom_call.1']
    #allocation4 [shape = 's32[2]{0}', space=sflag, size = 0x8, scoped, tag = 'scoped memory for tpu_custom_call.1']
    #allocation5 [shape = 'u8[16384]{0}', space=vmem, size = 0x4000, scoped, tag = 'input window, operand 1']
    #allocation6 [shape = 's32[2]{0}', space=sflag, size = 0x8, scoped, tag = 'scoped memory for tpu_custom_call.1']
    #allocation7 [shape = 'u8[32768]{0}', space=vmem, size = 0x8000, scoped, tag = 'input window, operand 3, single buffered']
    #allocation8 [shape = 'u8[131072]{0}', space=vmem, size = 0x20000, scoped, tag = 'input window, operand 7, single buffered']
    #allocation9 [shape = 's32[1]{0}', space=sflag, size = 0x4, scoped, tag = 'scoped memory for tpu_custom_call.1']
    #allocation10 [shape = 'u8[131072]{0}', space=vmem, size = 0x20000, scoped, tag = 'input window, operand 9, single buffered']
    #allocation11 [shape = 'u8[8192]{0}', space=vmem, size = 0x2000, scoped, tag = 'output window, operand 0']
    %18 = vsyncpa [#allocation3], 0
    %s19 = scalar_lea.sflag [#allocation3], 1
    %20 = vsyncpa %s19, 0
    %21 = vsyncpa [#allocation6], 0
    %s22 = scalar_lea.sflag [#allocation6], 1
    %23 = vsyncpa %s22, 0
    %24 = vsyncpa [#allocation9], 0
    %25 = vsyncpa [#allocation4], 0
    %s26 = scalar_lea.sflag [#allocation4], 1
    %27 = vsyncpa %s26, 0
    loop: start=0, step=1, limit=4
    $region2: #{tpu_custom_call.1} parent=1 // loop_pre_header
      _
    $region3: #{tpu_custom_call.1} parent=1 // loop_header
      %s29 = sphi 0, %s33
      %p30 = scmp.ge.s32.totalorder %s29, 4
      %s39 = sphi 0, %s41
      %s42 = sphi 0, %s39
      %s43 = sphi 0, %s42
      %s59 = sphi 0, %s43
      %s65 = sphi 0, %s67
      %s68 = sphi 0, %s65
      %s69 = sphi 0, %s68
      %s85 = sphi 0, %s69
      %s91 = sphi 0, %s93
      %s94 = sphi 0, %s91
      %s95 = sphi 0, %s94
      %s111 = sphi 0, %s95
      %s115 = sphi 0, %s115
      %s117 = sphi 0, %s115
      %s118 = sphi 0, %s117
      %s132 = sphi 0, %s118
      %s136 = sphi 0, %s136
      %s138 = sphi 0, %s136
      %s139 = sphi 0, %s138
      %s153 = sphi 0, %s139
      %s157 = sphi 0, %s157
      %s159 = sphi 0, %s157
      %s160 = sphi 0, %s159
      %s174 = sphi 0, %s160
      %s178 = sphi 0, %s178
      %s180 = sphi 0, %s178
      %s181 = sphi 0, %s180
      %s195 = sphi 0, %s181
      %s199 = sphi 0, %s199
      %s201 = sphi 0, %s199
      %s202 = sphi 0, %s201
      %s216 = sphi 0, %s202
      %s220 = sphi 0, %s220
      %s222 = sphi 0, %s220
      %s223 = sphi 0, %s222
      %s237 = sphi 0, %s223
      %s241 = sphi 0, %s241
      %s243 = sphi 0, %s241
      %s244 = sphi 0, %s243
      %s258 = sphi 0, %s244
      %s262 = sphi 0, %s262
      %s264 = sphi 0, %s262
      %s265 = sphi 0, %s264
      %s279 = sphi 0, %s265
      %s283 = sphi 0, %s283
      %s285 = sphi 0, %s283
      %s286 = sphi 0, %s285
      %s300 = sphi 0, %s286
      %s304 = sphi 0, %s304
      %s306 = sphi 0, %s304
      %s307 = sphi 0, %s306
      %s321 = sphi 0, %s307
      %s327 = sphi 0, %s329
      %s330 = sphi 0, %s327
      %s331 = sphi 0, %s330
      %s347 = sphi 0, %s331
    $region4: #{tpu_custom_call.1} parent=1 // loop_header_branch
      %32 = sbr.rel (%p30) target = $region8
    $region5: #{tpu_custom_call.1} parent=1 // loop_body
      %s34 = ssub.s32 %s29, 1
      %s35 = ssub.s32 %s29, 2
      %s36 = sadd.s32 %s29, 1
      %s37 = ssub.s32 %s29, %s36
      %p38 = scmp.eq.s32.totalorder %s37, 0
      %s40 = sadd.s32 %s39, 1
      %s41 = scalar_select %p38, %s39, %s40
      %p44 = pneg %p38
      %p45 = scmp.eq.s32.totalorder %s29, 1
      %p46 = por %p44, %p45
      %p47 = scmp.ne.s32.totalorder %s39, %s42
      %p48 = scmp.eq.s32.totalorder %s29, 0
      %p49 = por %p47, %p48
      %p50 = scmp.ne.s32.totalorder %s39, %s42
      %p51 = scmp.eq.s32.totalorder %s34, 1
      %p52 = por %p50, %p51
      %p53 = scmp.ne.s32.totalorder %s42, %s43
      %p54 = scmp.eq.s32.totalorder %s34, 0
      %p55 = por %p53, %p54
      %p56 = scmp.ne.s32.totalorder %s42, %s43
      %p57 = scmp.eq.s32.totalorder %s35, 1
      %p58 = por %p56, %p57
      %p60 = scmp.ne.s32.totalorder %s43, %s59
      %p61 = scmp.eq.s32.totalorder %s35, 0
      %p62 = por %p60, %p61
      %s63 = ssub.s32 %s29, %s36
      %p64 = scmp.eq.s32.totalorder %s63, 0
      %s66 = sadd.s32 %s65, 1
      %s67 = scalar_select %p64, %s65, %s66
      %p70 = pneg %p64
      %p71 = scmp.eq.s32.totalorder %s29, 1
      %p72 = por %p70, %p71
      %p73 = scmp.ne.s32.totalorder %s65, %s68
      %p74 = scmp.eq.s32.totalorder %s29, 0
      %p75 = por %p73, %p74
      %p76 = scmp.ne.s32.totalorder %s65, %s68
      %p77 = scmp.eq.s32.totalorder %s34, 1
      %p78 = por %p76, %p77
      %p79 = scmp.ne.s32.totalorder %s68, %s69
      %p80 = scmp.eq.s32.totalorder %s34, 0
      %p81 = por %p79, %p80
      %p82 = scmp.ne.s32.totalorder %s68, %s69
      %p83 = scmp.eq.s32.totalorder %s35, 1
      %p84 = por %p82, %p83
      %p86 = scmp.ne.s32.totalorder %s69, %s85
      %p87 = scmp.eq.s32.totalorder %s35, 0
      %p88 = por %p86, %p87
      %s89 = ssub.s32 %s29, %s36
      %p90 = scmp.eq.s32.totalorder %s89, 0
      %s92 = sadd.s32 %s91, 1
      %s93 = scalar_select %p90, %s91, %s92
      %p96 = pneg %p90
      %p97 = scmp.eq.s32.totalorder %s29, 1
      %p98 = por %p96, %p97
      %p99 = scmp.ne.s32.totalorder %s91, %s94
      %p100 = scmp.eq.s32.totalorder %s29, 0
      %p101 = por %p99, %p100
      %p102 = scmp.ne.s32.totalorder %s91, %s94
      %p103 = scmp.eq.s32.totalorder %s34, 1
      %p104 = por %p102, %p103
      %p105 = scmp.ne.s32.totalorder %s94, %s95
      %p106 = scmp.eq.s32.totalorder %s34, 0
      %p107 = por %p105, %p106
      %p108 = scmp.ne.s32.totalorder %s94, %s95
      %p109 = scmp.eq.s32.totalorder %s35, 1
      %p110 = por %p108, %p109
      %p112 = scmp.ne.s32.totalorder %s95, %s111
      %p113 = scmp.eq.s32.totalorder %s35, 0
      %p114 = por %p112, %p113
      %s116 = sadd.s32 %s115, 1
      %p119 = scmp.eq.s32.totalorder %s29, 1
      %p120 = scmp.ne.s32.totalorder %s115, %s117
      %p121 = scmp.eq.s32.totalorder %s29, 0
      %p122 = por %p120, %p121
      %p123 = scmp.ne.s32.totalorder %s115, %s117
      %p124 = scmp.eq.s32.totalorder %s34, 1
      %p125 = por %p123, %p124
      %p126 = scmp.ne.s32.totalorder %s117, %s118
      %p127 = scmp.eq.s32.totalorder %s34, 0
      %p128 = por %p126, %p127
      %p129 = scmp.ne.s32.totalorder %s117, %s118
      %p130 = scmp.eq.s32.totalorder %s35, 1
      %p131 = por %p129, %p130
      %p133 = scmp.ne.s32.totalorder %s118, %s132
      %p134 = scmp.eq.s32.totalorder %s35, 0
      %p135 = por %p133, %p134
      %s137 = sadd.s32 %s136, 1
      %p140 = scmp.eq.s32.totalorder %s29, 1
      %p141 = scmp.ne.s32.totalorder %s136, %s138
      %p142 = scmp.eq.s32.totalorder %s29, 0
      %p143 = por %p141, %p142
      %p144 = scmp.ne.s32.totalorder %s136, %s138
      %p145 = scmp.eq.s32.totalorder %s34, 1
      %p146 = por %p144, %p145
      %p147 = scmp.ne.s32.totalorder %s138, %s139
      %p148 = scmp.eq.s32.totalorder %s34, 0
      %p149 = por %p147, %p148
      %p150 = scmp.ne.s32.totalorder %s138, %s139
      %p151 = scmp.eq.s32.totalorder %s35, 1
      %p152 = por %p150, %p151
      %p154 = scmp.ne.s32.totalorder %s139, %s153
      %p155 = scmp.eq.s32.totalorder %s35, 0
      %p156 = por %p154, %p155
      %s158 = sadd.s32 %s157, 1
      %p161 = scmp.eq.s32.totalorder %s29, 1
      %p162 = scmp.ne.s32.totalorder %s157, %s159
      %p163 = scmp.eq.s32.totalorder %s29, 0
      %p164 = por %p162, %p163
      %p165 = scmp.ne.s32.totalorder %s157, %s159
      %p166 = scmp.eq.s32.totalorder %s34, 1
      %p167 = por %p165, %p166
      %p168 = scmp.ne.s32.totalorder %s159, %s160
      %p169 = scmp.eq.s32.totalorder %s34, 0
      %p170 = por %p168, %p169
      %p171 = scmp.ne.s32.totalorder %s159, %s160
      %p172 = scmp.eq.s32.totalorder %s35, 1
      %p173 = por %p171, %p172
      %p175 = scmp.ne.s32.totalorder %s160, %s174
      %p176 = scmp.eq.s32.totalorder %s35, 0
      %p177 = por %p175, %p176
      %s179 = sadd.s32 %s178, 1
      %p182 = scmp.eq.s32.totalorder %s29, 1
      %p183 = scmp.ne.s32.totalorder %s178, %s180
      %p184 = scmp.eq.s32.totalorder %s29, 0
      %p185 = por %p183, %p184
      %p186 = scmp.ne.s32.totalorder %s178, %s180
      %p187 = scmp.eq.s32.totalorder %s34, 1
      %p188 = por %p186, %p187
      %p189 = scmp.ne.s32.totalorder %s180, %s181
      %p190 = scmp.eq.s32.totalorder %s34, 0
      %p191 = por %p189, %p190
      %p192 = scmp.ne.s32.totalorder %s180, %s181
      %p193 = scmp.eq.s32.totalorder %s35, 1
      %p194 = por %p192, %p193
      %p196 = scmp.ne.s32.totalorder %s181, %s195
      %p197 = scmp.eq.s32.totalorder %s35, 0
      %p198 = por %p196, %p197
      %s200 = sadd.s32 %s199, 1
      %p203 = scmp.eq.s32.totalorder %s29, 1
      %p204 = scmp.ne.s32.totalorder %s199, %s201
      %p205 = scmp.eq.s32.totalorder %s29, 0
      %p206 = por %p204, %p205
      %p207 = scmp.ne.s32.totalorder %s199, %s201
      %p208 = scmp.eq.s32.totalorder %s34, 1
      %p209 = por %p207, %p208
      %p210 = scmp.ne.s32.totalorder %s201, %s202
      %p211 = scmp.eq.s32.totalorder %s34, 0
      %p212 = por %p210, %p211
      %p213 = scmp.ne.s32.totalorder %s201, %s202
      %p214 = scmp.eq.s32.totalorder %s35, 1
      %p215 = por %p213, %p214
      %p217 = scmp.ne.s32.totalorder %s202, %s216
      %p218 = scmp.eq.s32.totalorder %s35, 0
      %p219 = por %p217, %p218
      %s221 = sadd.s32 %s220, 1
      %p224 = scmp.eq.s32.totalorder %s29, 1
      %p225 = scmp.ne.s32.totalorder %s220, %s222
      %p226 = scmp.eq.s32.totalorder %s29, 0
      %p227 = por %p225, %p226
      %p228 = scmp.ne.s32.totalorder %s220, %s222
      %p229 = scmp.eq.s32.totalorder %s34, 1
      %p230 = por %p228, %p229
      %p231 = scmp.ne.s32.totalorder %s222, %s223
      %p232 = scmp.eq.s32.totalorder %s34, 0
      %p233 = por %p231, %p232
      %p234 = scmp.ne.s32.totalorder %s222, %s223
      %p235 = scmp.eq.s32.totalorder %s35, 1
      %p236 = por %p234, %p235
      %p238 = scmp.ne.s32.totalorder %s223, %s237
      %p239 = scmp.eq.s32.totalorder %s35, 0
      %p240 = por %p238, %p239
      %s242 = sadd.s32 %s241, 1
      %p245 = scmp.eq.s32.totalorder %s29, 1
      %p246 = scmp.ne.s32.totalorder %s241, %s243
      %p247 = scmp.eq.s32.totalorder %s29, 0
      %p248 = por %p246, %p247
      %p249 = scmp.ne.s32.totalorder %s241, %s243
      %p250 = scmp.eq.s32.totalorder %s34, 1
      %p251 = por %p249, %p250
      %p252 = scmp.ne.s32.totalorder %s243, %s244
      %p253 = scmp.eq.s32.totalorder %s34, 0
      %p254 = por %p252, %p253
      %p255 = scmp.ne.s32.totalorder %s243, %s244
      %p256 = scmp.eq.s32.totalorder %s35, 1
      %p257 = por %p255, %p256
      %p259 = scmp.ne.s32.totalorder %s244, %s258
      %p260 = scmp.eq.s32.totalorder %s35, 0
      %p261 = por %p259, %p260
      %s263 = sadd.s32 %s262, 1
      %p266 = scmp.eq.s32.totalorder %s29, 1
      %p267 = scmp.ne.s32.totalorder %s262, %s264
      %p268 = scmp.eq.s32.totalorder %s29, 0
      %p269 = por %p267, %p268
      %p270 = scmp.ne.s32.totalorder %s262, %s264
      %p271 = scmp.eq.s32.totalorder %s34, 1
      %p272 = por %p270, %p271
      %p273 = scmp.ne.s32.totalorder %s264, %s265
      %p274 = scmp.eq.s32.totalorder %s34, 0
      %p275 = por %p273, %p274
      %p276 = scmp.ne.s32.totalorder %s264, %s265
      %p277 = scmp.eq.s32.totalorder %s35, 1
      %p278 = por %p276, %p277
      %p280 = scmp.ne.s32.totalorder %s265, %s279
      %p281 = scmp.eq.s32.totalorder %s35, 0
      %p282 = por %p280, %p281
      %s284 = sadd.s32 %s283, 1
      %p287 = scmp.eq.s32.totalorder %s29, 1
      %p288 = scmp.ne.s32.totalorder %s283, %s285
      %p289 = scmp.eq.s32.totalorder %s29, 0
      %p290 = por %p288, %p289
      %p291 = scmp.ne.s32.totalorder %s283, %s285
      %p292 = scmp.eq.s32.totalorder %s34, 1
      %p293 = por %p291, %p292
      %p294 = scmp.ne.s32.totalorder %s285, %s286
      %p295 = scmp.eq.s32.totalorder %s34, 0
      %p296 = por %p294, %p295
      %p297 = scmp.ne.s32.totalorder %s285, %s286
      %p298 = scmp.eq.s32.totalorder %s35, 1
      %p299 = por %p297, %p298
      %p301 = scmp.ne.s32.totalorder %s286, %s300
      %p302 = scmp.eq.s32.totalorder %s35, 0
      %p303 = por %p301, %p302
      %s305 = sadd.s32 %s304, 1
      %p308 = scmp.eq.s32.totalorder %s29, 1
      %p309 = scmp.ne.s32.totalorder %s304, %s306
      %p310 = scmp.eq.s32.totalorder %s29, 0
      %p311 = por %p309, %p310
      %p312 = scmp.ne.s32.totalorder %s304, %s306
      %p313 = scmp.eq.s32.totalorder %s34, 1
      %p314 = por %p312, %p313
      %p315 = scmp.ne.s32.totalorder %s306, %s307
      %p316 = scmp.eq.s32.totalorder %s34, 0
      %p317 = por %p315, %p316
      %p318 = scmp.ne.s32.totalorder %s306, %s307
      %p319 = scmp.eq.s32.totalorder %s35, 1
      %p320 = por %p318, %p319
      %p322 = scmp.ne.s32.totalorder %s307, %s321
      %p323 = scmp.eq.s32.totalorder %s35, 0
      %p324 = por %p322, %p323
      %s325 = ssub.s32 %s29, %s36
      %p326 = scmp.eq.s32.totalorder %s325, 0
      %s328 = sadd.s32 %s327, 1
      %s329 = scalar_select %p326, %s327, %s328
      %p332 = pneg %p326
      %p333 = scmp.eq.s32.totalorder %s29, 1
      %p334 = por %p332, %p333
      %p335 = scmp.ne.s32.totalorder %s327, %s330
      %p336 = scmp.eq.s32.totalorder %s29, 0
      %p337 = por %p335, %p336
      %p338 = scmp.ne.s32.totalorder %s327, %s330
      %p339 = scmp.eq.s32.totalorder %s34, 1
      %p340 = por %p338, %p339
      %p341 = scmp.ne.s32.totalorder %s330, %s331
      %p342 = scmp.eq.s32.totalorder %s34, 0
      %p343 = por %p341, %p342
      %p344 = scmp.ne.s32.totalorder %s330, %s331
      %p345 = scmp.eq.s32.totalorder %s35, 1
      %p346 = por %p344, %p345
      %p348 = scmp.ne.s32.totalorder %s331, %s347
      %p349 = scmp.eq.s32.totalorder %s35, 0
      %p350 = por %p348, %p349
      %p351 = scmp.le.s32.totalorder 1, %s29
      %p352 = scmp.lt.s32.totalorder %s29, 3
      %p353 = pnand %p351, %p352
      %p354 = pneg %p353
      // Predicated region
      $region9: #{tpu_custom_call.1} parent=5 // pred_check
        _
      $region10: #{tpu_custom_call.1} parent=5 // pred_check_branch
        %356 = sbr.rel (%p353) target = $region12
      $region11: #{tpu_custom_call.1} parent=5 // pred_region
        %s357 = ssub.s32 %s29, 1
        // Predicated region
        $region13: #{tpu_custom_call.1} parent=11 // pred_check
          %p358 = pneg %p128
        $region14: #{tpu_custom_call.1} parent=11 // pred_check_branch
          %360 = sbr.rel (%p358) target = $region16
        $region15: #{tpu_custom_call.1} parent=11 // pred_region
          %s362 = ssub.s32 1024, 1024
          %363 = vsyncadd [#allocation6], %s362
          %s364 = sshll.u32 [#allocation7], 4
          %s365 = int_to_ptr.vmem [resolvable:$true] %s364
          %370 = dma.hbm_to_vmem [thread:$0]  %s3, 1024, %s365, [#allocation6], 64, 64, 4
        $region16: #{tpu_custom_call.1} parent=11 // pred_fallthru
          _
        // Predicated region
        $region17: #{tpu_custom_call.1} parent=11 // pred_check
          %p371 = pneg %p149
        $region18: #{tpu_custom_call.1} parent=11 // pred_check_branch
          %373 = sbr.rel (%p371) target = $region20
        $region19: #{tpu_custom_call.1} parent=11 // pred_region
          _
        $region20: #{tpu_custom_call.1} parent=11 // pred_fallthru
          _
        // Predicated region
        $region21: #{tpu_custom_call.1} parent=11 // pred_check
          %p374 = pneg %p170
        $region22: #{tpu_custom_call.1} parent=11 // pred_check_branch
          %376 = sbr.rel (%p374) target = $region24
        $region23: #{tpu_custom_call.1} parent=11 // pred_region
          _
        $region24: #{tpu_custom_call.1} parent=11 // pred_fallthru
          _
        // Predicated region
        $region25: #{tpu_custom_call.1} parent=11 // pred_check
          %p377 = pneg %p191
        $region26: #{tpu_custom_call.1} parent=11 // pred_check_branch
          %379 = sbr.rel (%p377) target = $region28
        $region27: #{tpu_custom_call.1} parent=11 // pred_region
          _
        $region28: #{tpu_custom_call.1} parent=11 // pred_fallthru
          _
        // Predicated region
        $region29: #{tpu_custom_call.1} parent=11 // pred_check
          %p380 = pneg %p212
        $region30: #{tpu_custom_call.1} parent=11 // pred_check_branch
          %382 = sbr.rel (%p380) target = $region32
        $region31: #{tpu_custom_call.1} parent=11 // pred_region
          %s384 = ssub.s32 4096, 4096
          %385 = vsyncadd [#allocation9], %s384
          %s386 = sshll.u32 [#allocation8], 4
          %s387 = int_to_ptr.vmem [resolvable:$true] %s386
          %392 = dma.hbm_to_vmem [thread:$0]  %s7, 4096, %s387, [#allocation9], 256, 256, 16
        $region32: #{tpu_custom_call.1} parent=11 // pred_fallthru
          _
        // Predicated region
        $region33: #{tpu_custom_call.1} parent=11 // pred_check
          %p393 = pneg %p233
        $region34: #{tpu_custom_call.1} parent=11 // pred_check_branch
          %395 = sbr.rel (%p393) target = $region36
        $region35: #{tpu_custom_call.1} parent=11 // pred_region
          _
        $region36: #{tpu_custom_call.1} parent=11 // pred_fallthru
          _
        // Predicated region
        $region37: #{tpu_custom_call.1} parent=11 // pred_check
          %p396 = pneg %p254
        $region38: #{tpu_custom_call.1} parent=11 // pred_check_branch
          %398 = sbr.rel (%p396) target = $region40
        $region39: #{tpu_custom_call.1} parent=11 // pred_region
          %s400 = ssub.s32 4096, 4096
          %401 = vsyncadd [#allocation9], %s400
          %s402 = sshll.u32 [#allocation10], 4
          %s403 = int_to_ptr.vmem [resolvable:$true] %s402
          %408 = dma.hbm_to_vmem [thread:$0]  %s9, 4096, %s403, [#allocation9], 64, 64, 4
        $region40: #{tpu_custom_call.1} parent=11 // pred_fallthru
          _
        // Predicated region
        $region41: #{tpu_custom_call.1} parent=11 // pred_check
          %p409 = pneg %p275
        $region42: #{tpu_custom_call.1} parent=11 // pred_check_branch
          %411 = sbr.rel (%p409) target = $region44
        $region43: #{tpu_custom_call.1} parent=11 // pred_region
          _
        $region44: #{tpu_custom_call.1} parent=11 // pred_fallthru
          _
        // Predicated region
        $region45: #{tpu_custom_call.1} parent=11 // pred_check
          %p412 = pneg %p296
        $region46: #{tpu_custom_call.1} parent=11 // pred_check_branch
          %414 = sbr.rel (%p412) target = $region48
        $region47: #{tpu_custom_call.1} parent=11 // pred_region
          _
        $region48: #{tpu_custom_call.1} parent=11 // pred_fallthru
          _
        // Predicated region
        $region49: #{tpu_custom_call.1} parent=11 // pred_check
          %p415 = pneg %p317
        $region50: #{tpu_custom_call.1} parent=11 // pred_check_branch
          %417 = sbr.rel (%p415) target = $region52
        $region51: #{tpu_custom_call.1} parent=11 // pred_region
          _
        $region52: #{tpu_custom_call.1} parent=11 // pred_fallthru
          _
      $region12: #{tpu_custom_call.1} parent=5 // pred_fallthru
        _
      %p418 = scmp.lt.s32.totalorder %s29, 2
      // Predicated region
      $region53: #{tpu_custom_call.1} parent=5 // pred_check
        %p419 = pneg %p418
      $region54: #{tpu_custom_call.1} parent=5 // pred_check_branch
        %421 = sbr.rel (%p419) target = $region56
      $region55: #{tpu_custom_call.1} parent=5 // pred_region
        // Predicated region
        $region57: #{tpu_custom_call.1} parent=55 // pred_check
          %p422 = pneg %p49
        $region58: #{tpu_custom_call.1} parent=55 // pred_check_branch
          %424 = sbr.rel (%p422) target = $region60
        $region59: #{tpu_custom_call.1} parent=55 // pred_region
          %s425 = sand.u32 %s39, 1
          %s426 = scalar_lea.sflag [#allocation3], %s425
          %s427 = sand.u32 %s39, 1
          %s428 = smul.addr %s427, 8
          %s429 = scalar_lea.vmem [#allocation2], %s428
          %s431 = ssub.s32 128, 128
          %432 = vsyncadd %s426, %s431
          %s433 = smul.addr %s29, 128
          %s434 = scalar_lea.hbm %s0, %s433
          %s436 = sshll.u32 %s429, 4
          %s437 = int_to_ptr.vmem [resolvable:$true] %s436
          %439 = dma.hbm_to_vmem [thread:$0]  %s434, 128, %s437, %s426
        $region60: #{tpu_custom_call.1} parent=55 // pred_fallthru
          _
        // Predicated region
        $region61: #{tpu_custom_call.1} parent=55 // pred_check
          %p440 = pneg %p75
        $region62: #{tpu_custom_call.1} parent=55 // pred_check_branch
          %442 = sbr.rel (%p440) target = $region64
        $region63: #{tpu_custom_call.1} parent=55 // pred_region
          %s443 = sand.u32 %s29, 1
          %s444 = scalar_lea.sflag [#allocation6], %s443
          %s445 = sand.u32 %s65, 1
          %s446 = smul.addr %s445, 16
          %s447 = scalar_lea.vmem [#allocation5], %s446
          %s449 = ssub.s32 256, 256
          %450 = vsyncadd %s444, %s449
          %s451 = smul.addr %s29, 4
          %s452 = smul.addr %s451, 64
          %s453 = scalar_lea.hbm %s1, %s452
          %s454 = sshll.u32 %s447, 4
          %s455 = int_to_ptr.vmem [resolvable:$true] %s454
          %460 = dma.hbm_to_vmem [thread:$0]  %s453, 256, %s455, %s444, 64, 64, 4
        $region64: #{tpu_custom_call.1} parent=55 // pred_fallthru
          _
        // Predicated region
        $region65: #{tpu_custom_call.1} parent=55 // pred_check
          %p461 = pneg %p101
        $region66: #{tpu_custom_call.1} parent=55 // pred_check_branch
          %463 = sbr.rel (%p461) target = $region68
        $region67: #{tpu_custom_call.1} parent=55 // pred_region
          %p464 = scmp.lt.s32.totalorder %s29, 1
          %s465 = scalar_select %p464, %s29, 1
          %s466 = scalar_lea.vmem %s2, %s465
        $region68: #{tpu_custom_call.1} parent=55 // pred_fallthru
          _
      $region56: #{tpu_custom_call.1} parent=5 // pred_fallthru
        _
      %p467 = scmp.le.s32.totalorder 1, %s29
      %p468 = scmp.lt.s32.totalorder %s29, 3
      %p469 = pnand %p467, %p468
      %p470 = pneg %p469
      // Predicated region
      $region69: #{tpu_custom_call.1} parent=5 // pred_check
        _
      $region70: #{tpu_custom_call.1} parent=5 // pred_check_branch
        %472 = sbr.rel (%p469) target = $region72
      $region71: #{tpu_custom_call.1} parent=5 // pred_region
        %s473 = ssub.s32 %s29, 1
        %s474 = sand.u32 %s42, 1
        %s475 = scalar_lea.sflag [#allocation3], %s474
        %s476 = sand.u32 %s42, 1
        %s477 = smul.addr %s476, 8
        %s478 = scalar_lea.vmem [#allocation2], %s477
        // Predicated region
        $region73: #{tpu_custom_call.1} parent=71 // pred_check
          %p479 = pneg %p55
        $region74: #{tpu_custom_call.1} parent=71 // pred_check_branch
          %481 = sbr.rel (%p479) target = $region76
        $region75: #{tpu_custom_call.1} parent=71 // pred_region
          %482 = dma.done %s475, 128
        $region76: #{tpu_custom_call.1} parent=71 // pred_fallthru
          _
        %s483 = sand.u32 %s34, 1
        %s484 = scalar_lea.sflag [#allocation6], %s483
        %s485 = sand.u32 %s68, 1
        %s486 = smul.addr %s485, 16
        %s487 = scalar_lea.vmem [#allocation5], %s486
        // Predicated region
        $region77: #{tpu_custom_call.1} parent=71 // pred_check
          %p488 = pneg %p81
        $region78: #{tpu_custom_call.1} parent=71 // pred_check_branch
          %490 = sbr.rel (%p488) target = $region80
        $region79: #{tpu_custom_call.1} parent=71 // pred_region
          %491 = dma.done %s484, 256
        $region80: #{tpu_custom_call.1} parent=71 // pred_fallthru
          _
        // Predicated region
        $region81: #{tpu_custom_call.1} parent=71 // pred_check
          %p492 = pneg %p128
        $region82: #{tpu_custom_call.1} parent=71 // pred_check_branch
          %494 = sbr.rel (%p492) target = $region84
        $region83: #{tpu_custom_call.1} parent=71 // pred_region
          %495 = dma.done [#allocation6], 1024
        $region84: #{tpu_custom_call.1} parent=71 // pred_fallthru
          _
        // Predicated region
        $region85: #{tpu_custom_call.1} parent=71 // pred_check
          %p496 = pneg %p212
        $region86: #{tpu_custom_call.1} parent=71 // pred_check_branch
          %498 = sbr.rel (%p496) target = $region88
        $region87: #{tpu_custom_call.1} parent=71 // pred_region
          %499 = dma.done [#allocation9], 4096
        $region88: #{tpu_custom_call.1} parent=71 // pred_fallthru
          _
        // Predicated region
        $region89: #{tpu_custom_call.1} parent=71 // pred_check
          %p500 = pneg %p254
        $region90: #{tpu_custom_call.1} parent=71 // pred_check_branch
          %502 = sbr.rel (%p500) target = $region92
        $region91: #{tpu_custom_call.1} parent=71 // pred_region
          %503 = dma.done [#allocation9], 4096
        $region92: #{tpu_custom_call.1} parent=71 // pred_fallthru
          _
        %s504 = sand.u32 %s42, 1
        %s505 = scalar_lea.sflag [#allocation3], %s504
        %s506 = sand.u32 %s42, 1
        %s507 = smul.addr %s506, 8
        %s508 = scalar_lea.vmem [#allocation2], %s507
        %p509 = pneg %p55
        %p510 = pneg %p52
        %s511 = sand.u32 %s34, 1
        %s512 = scalar_lea.sflag [#allocation6], %s511
        %s513 = sand.u32 %s68, 1
        %s514 = smul.addr %s513, 16
        %s515 = scalar_lea.vmem [#allocation5], %s514
        %p516 = pneg %p81
        %p517 = pneg %p78
        %p518 = scmp.lt.s32.totalorder %s34, 1
        %s519 = scalar_select %p518, %s34, 1
        %s520 = scalar_lea.vmem %s2, %s519
        %p521 = pneg %p107
        %p522 = pneg %p104
        %p523 = pneg %p128
        %p524 = pneg %p125
        %p525 = pneg %p149
        %p526 = pneg %p146
        %p527 = pneg %p170
        %p528 = pneg %p167
        %p529 = pneg %p191
        %p530 = pneg %p188
        %p531 = pneg %p212
        %p532 = pneg %p209
        %p533 = pneg %p233
        %p534 = pneg %p230
        %p535 = pneg %p254
        %p536 = pneg %p251
        %p537 = pneg %p275
        %p538 = pneg %p272
        %p539 = pneg %p296
        %p540 = pneg %p293
        %p541 = pneg %p317
        %p542 = pneg %p314
        %p543 = pneg %p343
        %p544 = pneg %p340
        %s545 = sand.u32 %s330, 1
        %s546 = scalar_lea.sflag [#allocation4], %s545
        %s547 = sand.u32 %s330, 1
        %s548 = smul.addr %s547, 8
        %s549 = scalar_lea.vmem [#allocation11], %s548
        %p550 = scmp.lt.s32.totalorder %s34, 1
        %s551 = scalar_select %p550, %s34, 1
        %s552 = scalar_lea.vmem %s2, %s551
        %v554 = vld [vmem:[%s478] sm:$0xff]
        %v555 = vld [vmem:[%s487] sm:$0xf]
        %v556 = vld [vmem:[%s487 + $0x4] sm:$0xf]
        %v557 = vld [vmem:[%s487 + $0x8] sm:$0xf]
        %v558 = vld [vmem:[%s487 + $0xc] sm:$0xf]
        %v559 = vld [vmem:[%s552] sm:$0x1]
        %vm560 = vcmask 261120
        %v562 = vsel %vm560, %v555, 0
        %564 = vmatprep.subr.bf16.mxu0 0
        %565 = vmatpush1.bf16.xpose.msra.mxu0 0
        %566 = vmatprep.subr.bf16.mxu0 0
        %567 = vmatpush1.bf16.xpose.msra.mxu0 0
        %568 = vmatprep.subr.bf16.mxu0 0
        %569 = vmatpush1.bf16.xpose.msra.mxu0 0
        %570 = vmatprep.subr.bf16.mxu0 0
        %571 = vmatpush1.bf16.xpose.msra.mxu0 0
        %572 = vmatprep.subr.bf16.mxu0 0
        %573 = vmatpush1.bf16.xpose.msra.mxu0 0
        %574 = vmatprep.subr.bf16.mxu0 0
        %575 = vmatpush1.bf16.xpose.msra.mxu0 0
        %576 = vmatprep.subr.bf16.mxu0 0
        %577 = vmatpush1.bf16.xpose.msra.mxu0 0
        %578 = vmatprep.subr.bf16.mxu0 0
        %579 = vmatpush1.bf16.xpose.msra.mxu0 %v562
        %580 = vmatprep.subr.bf16.mxu0 0
        %581 = vmatpush2.bf16.xpose.msra.mxu0 0
        %582 = vmatprep.subr.bf16.mxu0 0
        %583 = vmatpush2.bf16.xpose.msra.mxu0 0
        %584 = vmatprep.subr.bf16.mxu0 0
        %585 = vmatpush2.bf16.xpose.msra.mxu0 0
        %586 = vmatprep.subr.bf16.mxu0 0
        %587 = vmatpush2.bf16.xpose.msra.mxu0 0
        %588 = vmatprep.subr.bf16.mxu0 0
        %589 = vmatpush2.bf16.xpose.msra.mxu0 0
        %590 = vmatprep.subr.bf16.mxu0 0
        %591 = vmatpush2.bf16.xpose.msra.mxu0 0
        %592 = vmatprep.subr.bf16.mxu0 0
        %593 = vmatpush2.bf16.xpose.msra.mxu0 0
        %594 = vmatprep.subr.bf16.mxu0 0
        %595 = vmatpush2.bf16.xpose.msra.mxu0 0
        %596 = vmatprep.mubr.bf16.mxu0 0
        %597 = vmatmul.mubr.bf16.gmra.mxu0 %v562
        %v598 = vpop.f32.mrf.mxu0
        %v599 = vadd.f32 0.0, %v598
        %v600 = vpop.f32.mrf.mxu0
        %v601 = vpop.f32.mrf.mxu0
        %v602 = vpop.f32.mrf.mxu0
        %603 = vdwg.mxu0
        %v605 = vsel %vm560, %v556, 0
        %607 = vmatprep.subr.bf16.mxu0 0
        %608 = vmatpush1.bf16.xpose.msra.mxu0 0
        %609 = vmatprep.subr.bf16.mxu0 0
        %610 = vmatpush1.bf16.xpose.msra.mxu0 0
        %611 = vmatprep.subr.bf16.mxu0 0
        %612 = vmatpush1.bf16.xpose.msra.mxu0 0
        %613 = vmatprep.subr.bf16.mxu0 0
        %614 = vmatpush1.bf16.xpose.msra.mxu0 0
        %615 = vmatprep.subr.bf16.mxu0 0
        %616 = vmatpush1.bf16.xpose.msra.mxu0 0
        %617 = vmatprep.subr.bf16.mxu0 0
        %618 = vmatpush1.bf16.xpose.msra.mxu0 0
        %619 = vmatprep.subr.bf16.mxu0 0
        %620 = vmatpush1.bf16.xpose.msra.mxu0 0
        %621 = vmatprep.subr.bf16.mxu0 0
        %622 = vmatpush1.bf16.xpose.msra.mxu0 %v605
        %623 = vmatprep.subr.bf16.mxu0 0
        %624 = vmatpush2.bf16.xpose.msra.mxu0 0
        %625 = vmatprep.subr.bf16.mxu0 0
        %626 = vmatpush2.bf16.xpose.msra.mxu0 0
        %627 = vmatprep.subr.bf16.mxu0 0
        %628 = vmatpush2.bf16.xpose.msra.mxu0 0
        %629 = vmatprep.subr.bf16.mxu0 0
        %630 = vmatpush2.bf16.xpose.msra.mxu0 0
        %631 = vmatprep.subr.bf16.mxu0 0
        %632 = vmatpush2.bf16.xpose.msra.mxu0 0
        %633 = vmatprep.subr.bf16.mxu0 0
        %634 = vmatpush2.bf16.xpose.msra.mxu0 0
        %635 = vmatprep.subr.bf16.mxu0 0
        %636 = vmatpush2.bf16.xpose.msra.mxu0 0
        %637 = vmatprep.subr.bf16.mxu0 0
        %638 = vmatpush2.bf16.xpose.msra.mxu0 0
        %639 = vmatprep.mubr.bf16.mxu0 0
        %640 = vmatmul.mubr.bf16.gmra.mxu0 %v605
        %v641 = vpop.f32.mrf.mxu0
        %v642 = vadd.f32 0.0, %v641
        %v643 = vpop.f32.mrf.mxu0
        %v644 = vpop.f32.mrf.mxu0
        %v645 = vpop.f32.mrf.mxu0
        %646 = vdwg.mxu0
        %v648 = vsel %vm560, %v557, 0
        %650 = vmatprep.subr.bf16.mxu0 0
        %651 = vmatpush1.bf16.xpose.msra.mxu0 0
        %652 = vmatprep.subr.bf16.mxu0 0
        %653 = vmatpush1.bf16.xpose.msra.mxu0 0
        %654 = vmatprep.subr.bf16.mxu0 0
        %655 = vmatpush1.bf16.xpose.msra.mxu0 0
        %656 = vmatprep.subr.bf16.mxu0 0
        %657 = vmatpush1.bf16.xpose.msra.mxu0 0
        %658 = vmatprep.subr.bf16.mxu0 0
        %659 = vmatpush1.bf16.xpose.msra.mxu0 0
        %660 = vmatprep.subr.bf16.mxu0 0
        %661 = vmatpush1.bf16.xpose.msra.mxu0 0
        %662 = vmatprep.subr.bf16.mxu0 0
        %663 = vmatpush1.bf16.xpose.msra.mxu0 0
        %664 = vmatprep.subr.bf16.mxu0 0
        %665 = vmatpush1.bf16.xpose.msra.mxu0 %v648
        %666 = vmatprep.subr.bf16.mxu0 0
        %667 = vmatpush2.bf16.xpose.msra.mxu0 0
        %668 = vmatprep.subr.bf16.mxu0 0
        %669 = vmatpush2.bf16.xpose.msra.mxu0 0
        %670 = vmatprep.subr.bf16.mxu0 0
        %671 = vmatpush2.bf16.xpose.msra.mxu0 0
        %672 = vmatprep.subr.bf16.mxu0 0
        %673 = vmatpush2.bf16.xpose.msra.mxu0 0
        %674 = vmatprep.subr.bf16.mxu0 0
        %675 = vmatpush2.bf16.xpose.msra.mxu0 0
        %676 = vmatprep.subr.bf16.mxu0 0
        %677 = vmatpush2.bf16.xpose.msra.mxu0 0
        %678 = vmatprep.subr.bf16.mxu0 0
        %679 = vmatpush2.bf16.xpose.msra.mxu0 0
        %680 = vmatprep.subr.bf16.mxu0 0
        %681 = vmatpush2.bf16.xpose.msra.mxu0 0
        %682 = vmatprep.mubr.bf16.mxu0 0
        %683 = vmatmul.mubr.bf16.gmra.mxu0 %v648
        %v684 = vpop.f32.mrf.mxu0
        %v685 = vadd.f32 0.0, %v684
        %v686 = vpop.f32.mrf.mxu0
        %v687 = vpop.f32.mrf.mxu0
        %v688 = vpop.f32.mrf.mxu0
        %689 = vdwg.mxu0
        %v691 = vsel %vm560, %v558, 0
        %693 = vmatprep.subr.bf16.mxu0 0
        %694 = vmatpush1.bf16.xpose.msra.mxu0 0
        %695 = vmatprep.subr.bf16.mxu0 0
        %696 = vmatpush1.bf16.xpose.msra.mxu0 0
        %697 = vmatprep.subr.bf16.mxu0 0
        %698 = vmatpush1.bf16.xpose.msra.mxu0 0
        %699 = vmatprep.subr.bf16.mxu0 0
        %700 = vmatpush1.bf16.xpose.msra.mxu0 0
        %701 = vmatprep.subr.bf16.mxu0 0
        %702 = vmatpush1.bf16.xpose.msra.mxu0 0
        %703 = vmatprep.subr.bf16.mxu0 0
        %704 = vmatpush1.bf16.xpose.msra.mxu0 0
        %705 = vmatprep.subr.bf16.mxu0 0
        %706 = vmatpush1.bf16.xpose.msra.mxu0 0
        %707 = vmatprep.subr.bf16.mxu0 0
        %708 = vmatpush1.bf16.xpose.msra.mxu0 %v691
        %709 = vmatprep.subr.bf16.mxu0 0
        %710 = vmatpush2.bf16.xpose.msra.mxu0 0
        %711 = vmatprep.subr.bf16.mxu0 0
        %712 = vmatpush2.bf16.xpose.msra.mxu0 0
        %713 = vmatprep.subr.bf16.mxu0 0
        %714 = vmatpush2.bf16.xpose.msra.mxu0 0
        %715 = vmatprep.subr.bf16.mxu0 0
        %716 = vmatpush2.bf16.xpose.msra.mxu0 0
        %717 = vmatprep.subr.bf16.mxu0 0
        %718 = vmatpush2.bf16.xpose.msra.mxu0 0
        %719 = vmatprep.subr.bf16.mxu0 0
        %720 = vmatpush2.bf16.xpose.msra.mxu0 0
        %721 = vmatprep.subr.bf16.mxu0 0
        %722 = vmatpush2.bf16.xpose.msra.mxu0 0
        %723 = vmatprep.subr.bf16.mxu0 0
        %724 = vmatpush2.bf16.xpose.msra.mxu0 0
        %725 = vmatprep.mubr.bf16.mxu0 0
        %726 = vmatmul.mubr.bf16.gmra.mxu0 %v691
        %v727 = vpop.f32.mrf.mxu0
        %v728 = vadd.f32 0.0, %v727
        %v729 = vpop.f32.mrf.mxu0
        %v730 = vpop.f32.mrf.mxu0
        %v731 = vpop.f32.mrf.mxu0
        %732 = vdwg.mxu0
        %vm733 = vcmp.eq.f32.partialorder %v559, 0.0
        %v734 = vsel %vm733, 1, 0
        %v735 = vlaneseq
        %v736 = vshrl.u32 %v735, 7
        %v737 = vsub.s32 0, %v736
        %v738 = vrot.slane %v734, %v737
        %vm739 = vcmp.eq.s32.totalorder %v738, 1
        %v740 = vsel %vm739, -1e+20, %v599
        %v741 = vsel %vm739, -1e+20, %v642
        %v742 = vsel %vm739, -1e+20, %v685
        %v743 = vsel %vm739, -1e+20, %v728
        %v744 = vmul.f32 %v740, 0.088388346
        %v745 = vmul.f32 %v741, 0.088388346
        %v746 = vmul.f32 %v742, 0.088388346
        %v747 = vmul.f32 %v743, 0.088388346
        %vm748 = vcmask 64512
        %v749 = vsel %vm748, %v744, -inf
        %750 = vmax.xlane.f32.xlu0 %v749
        %v751 = vpop.xlane.xlu0 %750
        %v752 = vsel %vm748, %v745, -inf
        %753 = vmax.xlane.f32.xlu0 %v752
        %v754 = vpop.xlane.xlu0 %753
        %v755 = vsel %vm748, %v746, -inf
        %756 = vmax.xlane.f32.xlu0 %v755
        %v757 = vpop.xlane.xlu0 %756
        %v758 = vsel %vm748, %v747, -inf
        %759 = vmax.xlane.f32.xlu0 %v758
        %v760 = vpop.xlane.xlu0 %759
        %v761 = vsub.f32 %v744, %v751
        %v762 = vsub.f32 %v745, %v754
        %v763 = vsub.f32 %v746, %v757
        %v764 = vsub.f32 %v747, %v760
        %v765 = vmul.f32 %v761, 1.442695
        %v766 = vpow.pop %v765
        %v767 = vmul.f32 %v762, 1.442695
        %v768 = vpow.pop %v767
        %v769 = vmul.f32 %v763, 1.442695
        %v770 = vpow.pop %v769
        %v771 = vmul.f32 %v764, 1.442695
        %v772 = vpow.pop %v771
        %v773 = vsel %vm748, %v766, 0.0
        %774 = vadd.xlane.f32.xlu0 %v773
        %v775 = vpop.xlane.xlu0 %774
        %v776 = vsel %vm748, %v768, 0.0
        %777 = vadd.xlane.f32.xlu0 %v776
        %v778 = vpop.xlane.xlu0 %777
        %v779 = vsel %vm748, %v770, 0.0
        %780 = vadd.xlane.f32.xlu0 %v779
        %v781 = vpop.xlane.xlu0 %780
        %v782 = vsel %vm748, %v772, 0.0
        %783 = vadd.xlane.f32.xlu0 %v782
        %v784 = vpop.xlane.xlu0 %783
        %v785 = vrcp.pop %v775
        %v786 = vrcp.pop %v778
        %v787 = vrcp.pop %v781
        %v788 = vrcp.pop %v784
        %v789 = vmul.f32 %v766, %v785
        %v790 = vmul.f32 %v768, %v786
        %v791 = vmul.f32 %v770, %v787
        %v792 = vmul.f32 %v772, %v788
        %v793 = vpack.c.bf16 %v789, %v789
        %v794 = vpack.c.bf16 %v790, %v790
        %v795 = vpack.c.bf16 %v791, %v791
        %v796 = vpack.c.bf16 %v792, %v792
        %v798 = vsel %vm748, %v793, 0
        %vm800 = vcmask 1043456
        %v801 = vsel %vm800, %v555, 0
        %803 = vmatprep.subr.bf16.mxu0 0
        %804 = vmatpush1.bf16.msra.mxu0 0
        %805 = vmatprep.subr.bf16.mxu0 0
        %806 = vmatpush1.bf16.msra.mxu0 0
        %807 = vmatprep.subr.bf16.mxu0 0
        %808 = vmatpush1.bf16.msra.mxu0 0
        %809 = vmatprep.subr.bf16.mxu0 0
        %810 = vmatpush1.bf16.msra.mxu0 0
        %811 = vmatprep.subr.bf16.mxu0 0
        %812 = vmatpush1.bf16.msra.mxu0 0
        %813 = vmatprep.subr.bf16.mxu0 0
        %814 = vmatpush1.bf16.msra.mxu0 0
        %815 = vmatprep.subr.bf16.mxu0 0
        %816 = vmatpush1.bf16.msra.mxu0 0
        %817 = vmatprep.subr.bf16.mxu0 0
        %818 = vmatpush1.bf16.msra.mxu0 %v801
        %819 = vmatprep.subr.bf16.mxu0 0
        %820 = vmatpush2.bf16.msra.mxu0 0
        %821 = vmatprep.subr.bf16.mxu0 0
        %822 = vmatpush2.bf16.msra.mxu0 0
        %823 = vmatprep.subr.bf16.mxu0 0
        %824 = vmatpush2.bf16.msra.mxu0 0
        %825 = vmatprep.subr.bf16.mxu0 0
        %826 = vmatpush2.bf16.msra.mxu0 0
        %827 = vmatprep.subr.bf16.mxu0 0
        %828 = vmatpush2.bf16.msra.mxu0 0
        %829 = vmatprep.subr.bf16.mxu0 0
        %830 = vmatpush2.bf16.msra.mxu0 0
        %831 = vmatprep.subr.bf16.mxu0 0
        %832 = vmatpush2.bf16.msra.mxu0 0
        %833 = vmatprep.subr.bf16.mxu0 0
        %834 = vmatpush2.bf16.msra.mxu0 0
        %835 = vmatprep.mubr.bf16.mxu0 0
        %836 = vmatmul.mubr.bf16.gmra.mxu0 %v798
        %v837 = vpop.f32.mrf.mxu0
        %v838 = vadd.f32 0.0, %v837
        %v839 = vpop.f32.mrf.mxu0
        %v840 = vpop.f32.mrf.mxu0
        %v841 = vpop.f32.mrf.mxu0
        %842 = vdwg.mxu0
        %v844 = vsel %vm748, %v794, 0
        %v846 = vsel %vm800, %v556, 0
        %848 = vmatprep.subr.bf16.mxu0 0
        %849 = vmatpush1.bf16.msra.mxu0 0
        %850 = vmatprep.subr.bf16.mxu0 0
        %851 = vmatpush1.bf16.msra.mxu0 0
        %852 = vmatprep.subr.bf16.mxu0 0
        %853 = vmatpush1.bf16.msra.mxu0 0
        %854 = vmatprep.subr.bf16.mxu0 0
        %855 = vmatpush1.bf16.msra.mxu0 0
        %856 = vmatprep.subr.bf16.mxu0 0
        %857 = vmatpush1.bf16.msra.mxu0 0
        %858 = vmatprep.subr.bf16.mxu0 0
        %859 = vmatpush1.bf16.msra.mxu0 0
        %860 = vmatprep.subr.bf16.mxu0 0
        %861 = vmatpush1.bf16.msra.mxu0 0
        %862 = vmatprep.subr.bf16.mxu0 0
        %863 = vmatpush1.bf16.msra.mxu0 %v846
        %864 = vmatprep.subr.bf16.mxu0 0
        %865 = vmatpush2.bf16.msra.mxu0 0
        %866 = vmatprep.subr.bf16.mxu0 0
        %867 = vmatpush2.bf16.msra.mxu0 0
        %868 = vmatprep.subr.bf16.mxu0 0
        %869 = vmatpush2.bf16.msra.mxu0 0
        %870 = vmatprep.subr.bf16.mxu0 0
        %871 = vmatpush2.bf16.msra.mxu0 0
        %872 = vmatprep.subr.bf16.mxu0 0
        %873 = vmatpush2.bf16.msra.mxu0 0
        %874 = vmatprep.subr.bf16.mxu0 0
        %875 = vmatpush2.bf16.msra.mxu0 0
        %876 = vmatprep.subr.bf16.mxu0 0
        %877 = vmatpush2.bf16.msra.mxu0 0
        %878 = vmatprep.subr.bf16.mxu0 0
        %879 = vmatpush2.bf16.msra.mxu0 0
        %880 = vmatprep.mubr.bf16.mxu0 0
        %881 = vmatmul.mubr.bf16.gmra.mxu0 %v844
        %v882 = vpop.f32.mrf.mxu0
        %v883 = vadd.f32 0.0, %v882
        %v884 = vpop.f32.mrf.mxu0
        %v885 = vpop.f32.mrf.mxu0
        %v886 = vpop.f32.mrf.mxu0
        %887 = vdwg.mxu0
        %v889 = vsel %vm748, %v795, 0
        %v891 = vsel %vm800, %v557, 0
        %893 = vmatprep.subr.bf16.mxu0 0
        %894 = vmatpush1.bf16.msra.mxu0 0
        %895 = vmatprep.subr.bf16.mxu0 0
        %896 = vmatpush1.bf16.msra.mxu0 0
        %897 = vmatprep.subr.bf16.mxu0 0
        %898 = vmatpush1.bf16.msra.mxu0 0
        %899 = vmatprep.subr.bf16.mxu0 0
        %900 = vmatpush1.bf16.msra.mxu0 0
        %901 = vmatprep.subr.bf16.mxu0 0
        %902 = vmatpush1.bf16.msra.mxu0 0
        %903 = vmatprep.subr.bf16.mxu0 0
        %904 = vmatpush1.bf16.msra.mxu0 0
        %905 = vmatprep.subr.bf16.mxu0 0
        %906 = vmatpush1.bf16.msra.mxu0 0
        %907 = vmatprep.subr.bf16.mxu0 0
        %908 = vmatpush1.bf16.msra.mxu0 %v891
        %909 = vmatprep.subr.bf16.mxu0 0
        %910 = vmatpush2.bf16.msra.mxu0 0
        %911 = vmatprep.subr.bf16.mxu0 0
        %912 = vmatpush2.bf16.msra.mxu0 0
        %913 = vmatprep.subr.bf16.mxu0 0
        %914 = vmatpush2.bf16.msra.mxu0 0
        %915 = vmatprep.subr.bf16.mxu0 0
        %916 = vmatpush2.bf16.msra.mxu0 0
        %917 = vmatprep.subr.bf16.mxu0 0
        %918 = vmatpush2.bf16.msra.mxu0 0
        %919 = vmatprep.subr.bf16.mxu0 0
        %920 = vmatpush2.bf16.msra.mxu0 0
        %921 = vmatprep.subr.bf16.mxu0 0
        %922 = vmatpush2.bf16.msra.mxu0 0
        %923 = vmatprep.subr.bf16.mxu0 0
        %924 = vmatpush2.bf16.msra.mxu0 0
        %925 = vmatprep.mubr.bf16.mxu0 0
        %926 = vmatmul.mubr.bf16.gmra.mxu0 %v889
        %v927 = vpop.f32.mrf.mxu0
        %v928 = vadd.f32 0.0, %v927
        %v929 = vpop.f32.mrf.mxu0
        %v930 = vpop.f32.mrf.mxu0
        %v931 = vpop.f32.mrf.mxu0
        %932 = vdwg.mxu0
        %v934 = vsel %vm748, %v796, 0
        %v936 = vsel %vm800, %v558, 0
        %938 = vmatprep.subr.bf16.mxu0 0
        %939 = vmatpush1.bf16.msra.mxu0 0
        %940 = vmatprep.subr.bf16.mxu0 0
        %941 = vmatpush1.bf16.msra.mxu0 0
        %942 = vmatprep.subr.bf16.mxu0 0
        %943 = vmatpush1.bf16.msra.mxu0 0
        %944 = vmatprep.subr.bf16.mxu0 0
        %945 = vmatpush1.bf16.msra.mxu0 0
        %946 = vmatprep.subr.bf16.mxu0 0
        %947 = vmatpush1.bf16.msra.mxu0 0
        %948 = vmatprep.subr.bf16.mxu0 0
        %949 = vmatpush1.bf16.msra.mxu0 0
        %950 = vmatprep.subr.bf16.mxu0 0
        %951 = vmatpush1.bf16.msra.mxu0 0
        %952 = vmatprep.subr.bf16.mxu0 0
        %953 = vmatpush1.bf16.msra.mxu0 %v936
        %954 = vmatprep.subr.bf16.mxu0 0
        %955 = vmatpush2.bf16.msra.mxu0 0
        %956 = vmatprep.subr.bf16.mxu0 0
        %957 = vmatpush2.bf16.msra.mxu0 0
        %958 = vmatprep.subr.bf16.mxu0 0
        %959 = vmatpush2.bf16.msra.mxu0 0
        %960 = vmatprep.subr.bf16.mxu0 0
        %961 = vmatpush2.bf16.msra.mxu0 0
        %962 = vmatprep.subr.bf16.mxu0 0
        %963 = vmatpush2.bf16.msra.mxu0 0
        %964 = vmatprep.subr.bf16.mxu0 0
        %965 = vmatpush2.bf16.msra.mxu0 0
        %966 = vmatprep.subr.bf16.mxu0 0
        %967 = vmatpush2.bf16.msra.mxu0 0
        %968 = vmatprep.subr.bf16.mxu0 0
        %969 = vmatpush2.bf16.msra.mxu0 0
        %970 = vmatprep.mubr.bf16.mxu0 0
        %971 = vmatmul.mubr.bf16.gmra.mxu0 %v934
        %v972 = vpop.f32.mrf.mxu0
        %v973 = vadd.f32 0.0, %v972
        %v974 = vpop.f32.mrf.mxu0
        %v975 = vpop.f32.mrf.mxu0
        %v976 = vpop.f32.mrf.mxu0
        %977 = vdwg.mxu0
        %v978 = vpack.c.bf16 %v838, %v838
        %v979 = vpack.c.bf16 %v883, %v883
        %v980 = vpack.c.bf16 %v928, %v928
        %v981 = vpack.c.bf16 %v973, %v973
        %v982 = vld [vmem:[#allocation7] sm:$0xf]
        %v983 = vld [vmem:[#allocation7 + $0x4] sm:$0xf]
        %v984 = vld [vmem:[#allocation7 + $0x8] sm:$0xf]
        %v985 = vld [vmem:[#allocation7 + $0xc] sm:$0xf]
        %v986 = vld [vmem:[#allocation7 + $0x10] sm:$0xf]
        %v987 = vld [vmem:[#allocation7 + $0x14] sm:$0xf]
        %v988 = vld [vmem:[#allocation7 + $0x18] sm:$0xf]
        %v989 = vld [vmem:[#allocation7 + $0x1c] sm:$0xf]
        %v990 = vld [vmem:[#allocation7 + $0x20] sm:$0xf]
        %v991 = vld [vmem:[#allocation7 + $0x24] sm:$0xf]
        %v992 = vld [vmem:[#allocation7 + $0x28] sm:$0xf]
        %v993 = vld [vmem:[#allocation7 + $0x2c] sm:$0xf]
        %v994 = vld [vmem:[#allocation7 + $0x30] sm:$0xf]
        %v995 = vld [vmem:[#allocation7 + $0x34] sm:$0xf]
        %v996 = vld [vmem:[#allocation7 + $0x38] sm:$0xf]
        %v997 = vld [vmem:[#allocation7 + $0x3c] sm:$0xf]
        %v1002 = vunpack.c.l.b16 %v982
        %v1003 = vunpack.c.l.b16 %v983
        %v1004 = vunpack.c.l.b16 %v984
        %v1005 = vunpack.c.l.b16 %v985
        %v1006 = vpack.c.b16 %v1003, %v1002
        %v1007 = vpack.c.b16 %v1005, %v1004
        %v1011 = vsel %vm560, %v978, 0
        %1013 = vmatprep.subr.bf16.mxu0 0
        %1014 = vmatpush1.bf16.msra.mxu0 0
        %1015 = vmatprep.subr.bf16.mxu0 0
        %1016 = vmatpush1.bf16.msra.mxu0 0
        %1017 = vmatprep.subr.bf16.mxu0 0
        %1018 = vmatpush1.bf16.msra.mxu0 0
        %1019 = vmatprep.subr.bf16.mxu0 0
        %1020 = vmatpush1.bf16.msra.mxu0 0
        %1021 = vmatprep.subr.bf16.mxu0 0
        %1022 = vmatpush1.bf16.msra.mxu0 0
        %1023 = vmatprep.subr.bf16.mxu0 0
        %1024 = vmatpush1.bf16.msra.mxu0 0
        %1025 = vmatprep.subr.bf16.mxu0 0
        %1026 = vmatpush1.bf16.msra.mxu0 %v1007
        %1027 = vmatprep.subr.bf16.mxu0 0
        %1028 = vmatpush1.bf16.msra.mxu0 %v1006
        %1029 = vmatprep.subr.bf16.mxu0 0
        %1030 = vmatpush2.bf16.msra.mxu0 0
        %1031 = vmatprep.subr.bf16.mxu0 0
        %1032 = vmatpush2.bf16.msra.mxu0 0
        %1033 = vmatprep.subr.bf16.mxu0 0
        %1034 = vmatpush2.bf16.msra.mxu0 0
        %1035 = vmatprep.subr.bf16.mxu0 0
        %1036 = vmatpush2.bf16.msra.mxu0 0
        %1037 = vmatprep.subr.bf16.mxu0 0
        %1038 = vmatpush2.bf16.msra.mxu0 0
        %1039 = vmatprep.subr.bf16.mxu0 0
        %1040 = vmatpush2.bf16.msra.mxu0 0
        %1041 = vmatprep.subr.bf16.mxu0 0
        %1042 = vmatpush2.bf16.msra.mxu0 0
        %1043 = vmatprep.subr.bf16.mxu0 0
        %1044 = vmatpush2.bf16.msra.mxu0 0
        %1045 = vmatprep.mubr.bf16.mxu0 0
        %1046 = vmatmul.mubr.bf16.gmra.mxu0 %v1011
        %v1047 = vpop.f32.mrf.mxu0
        %v1048 = vadd.f32 0.0, %v1047
        %v1049 = vpop.f32.mrf.mxu0
        %v1050 = vpop.f32.mrf.mxu0
        %v1051 = vpop.f32.mrf.mxu0
        %1052 = vdwg.mxu0
        %v1057 = vunpack.c.l.b16 %v986
        %v1058 = vunpack.c.l.b16 %v987
        %v1059 = vunpack.c.l.b16 %v988
        %v1060 = vunpack.c.l.b16 %v989
        %v1061 = vpack.c.b16 %v1058, %v1057
        %v1062 = vpack.c.b16 %v1060, %v1059
        %v1066 = vsel %vm560, %v979, 0
        %1068 = vmatprep.subr.bf16.mxu0 0
        %1069 = vmatpush1.bf16.msra.mxu0 0
        %1070 = vmatprep.subr.bf16.mxu0 0
        %1071 = vmatpush1.bf16.msra.mxu0 0
        %1072 = vmatprep.subr.bf16.mxu0 0
        %1073 = vmatpush1.bf16.msra.mxu0 0
        %1074 = vmatprep.subr.bf16.mxu0 0
        %1075 = vmatpush1.bf16.msra.mxu0 0
        %1076 = vmatprep.subr.bf16.mxu0 0
        %1077 = vmatpush1.bf16.msra.mxu0 0
        %1078 = vmatprep.subr.bf16.mxu0 0
        %1079 = vmatpush1.bf16.msra.mxu0 0
        %1080 = vmatprep.subr.bf16.mxu0 0
        %1081 = vmatpush1.bf16.msra.mxu0 %v1062
        %1082 = vmatprep.subr.bf16.mxu0 0
        %1083 = vmatpush1.bf16.msra.mxu0 %v1061
        %1084 = vmatprep.subr.bf16.mxu0 0
        %1085 = vmatpush2.bf16.msra.mxu0 0
        %1086 = vmatprep.subr.bf16.mxu0 0
        %1087 = vmatpush2.bf16.msra.mxu0 0
        %1088 = vmatprep.subr.bf16.mxu0 0
        %1089 = vmatpush2.bf16.msra.mxu0 0
        %1090 = vmatprep.subr.bf16.mxu0 0
        %1091 = vmatpush2.bf16.msra.mxu0 0
        %1092 = vmatprep.subr.bf16.mxu0 0
        %1093 = vmatpush2.bf16.msra.mxu0 0
        %1094 = vmatprep.subr.bf16.mxu0 0
        %1095 = vmatpush2.bf16.msra.mxu0 0
        %1096 = vmatprep.subr.bf16.mxu0 0
        %1097 = vmatpush2.bf16.msra.mxu0 0
        %1098 = vmatprep.subr.bf16.mxu0 0
        %1099 = vmatpush2.bf16.msra.mxu0 0
        %1100 = vmatprep.mubr.bf16.mxu0 0
        %1101 = vmatmul.mubr.bf16.gmra.mxu0 %v1066
        %v1102 = vpop.f32.mrf.mxu0
        %v1103 = vadd.f32 0.0, %v1102
        %v1104 = vpop.f32.mrf.mxu0
        %v1105 = vpop.f32.mrf.mxu0
        %v1106 = vpop.f32.mrf.mxu0
        %1107 = vdwg.mxu0
        %v1112 = vunpack.c.l.b16 %v990
        %v1113 = vunpack.c.l.b16 %v991
        %v1114 = vunpack.c.l.b16 %v992
        %v1115 = vunpack.c.l.b16 %v993
        %v1116 = vpack.c.b16 %v1113, %v1112
        %v1117 = vpack.c.b16 %v1115, %v1114
        %v1121 = vsel %vm560, %v980, 0
        %1123 = vmatprep.subr.bf16.mxu0 0
        %1124 = vmatpush1.bf16.msra.mxu0 0
        %1125 = vmatprep.subr.bf16.mxu0 0
        %1126 = vmatpush1.bf16.msra.mxu0 0
        %1127 = vmatprep.subr.bf16.mxu0 0
        %1128 = vmatpush1.bf16.msra.mxu0 0
        %1129 = vmatprep.subr.bf16.mxu0 0
        %1130 = vmatpush1.bf16.msra.mxu0 0
        %1131 = vmatprep.subr.bf16.mxu0 0
        %1132 = vmatpush1.bf16.msra.mxu0 0
        %1133 = vmatprep.subr.bf16.mxu0 0
        %1134 = vmatpush1.bf16.msra.mxu0 0
        %1135 = vmatprep.subr.bf16.mxu0 0
        %1136 = vmatpush1.bf16.msra.mxu0 %v1117
        %1137 = vmatprep.subr.bf16.mxu0 0
        %1138 = vmatpush1.bf16.msra.mxu0 %v1116
        %1139 = vmatprep.subr.bf16.mxu0 0
        %1140 = vmatpush2.bf16.msra.mxu0 0
        %1141 = vmatprep.subr.bf16.mxu0 0
        %1142 = vmatpush2.bf16.msra.mxu0 0
        %1143 = vmatprep.subr.bf16.mxu0 0
        %1144 = vmatpush2.bf16.msra.mxu0 0
        %1145 = vmatprep.subr.bf16.mxu0 0
        %1146 = vmatpush2.bf16.msra.mxu0 0
        %1147 = vmatprep.subr.bf16.mxu0 0
        %1148 = vmatpush2.bf16.msra.mxu0 0
        %1149 = vmatprep.subr.bf16.mxu0 0
        %1150 = vmatpush2.bf16.msra.mxu0 0
        %1151 = vmatprep.subr.bf16.mxu0 0
        %1152 = vmatpush2.bf16.msra.mxu0 0
        %1153 = vmatprep.subr.bf16.mxu0 0
        %1154 = vmatpush2.bf16.msra.mxu0 0
        %1155 = vmatprep.mubr.bf16.mxu0 0
        %1156 = vmatmul.mubr.bf16.gmra.mxu0 %v1121
        %v1157 = vpop.f32.mrf.mxu0
        %v1158 = vadd.f32 0.0, %v1157
        %v1159 = vpop.f32.mrf.mxu0
        %v1160 = vpop.f32.mrf.mxu0
        %v1161 = vpop.f32.mrf.mxu0
        %1162 = vdwg.mxu0
        %v1167 = vunpack.c.l.b16 %v994
        %v1168 = vunpack.c.l.b16 %v995
        %v1169 = vunpack.c.l.b16 %v996
        %v1170 = vunpack.c.l.b16 %v997
        %v1171 = vpack.c.b16 %v1168, %v1167
        %v1172 = vpack.c.b16 %v1170, %v1169
        %v1176 = vsel %vm560, %v981, 0
        %1178 = vmatprep.subr.bf16.mxu0 0
        %1179 = vmatpush1.bf16.msra.mxu0 0
        %1180 = vmatprep.subr.bf16.mxu0 0
        %1181 = vmatpush1.bf16.msra.mxu0 0
        %1182 = vmatprep.subr.bf16.mxu0 0
        %1183 = vmatpush1.bf16.msra.mxu0 0
        %1184 = vmatprep.subr.bf16.mxu0 0
        %1185 = vmatpush1.bf16.msra.mxu0 0
        %1186 = vmatprep.subr.bf16.mxu0 0
        %1187 = vmatpush1.bf16.msra.mxu0 0
        %1188 = vmatprep.subr.bf16.mxu0 0
        %1189 = vmatpush1.bf16.msra.mxu0 0
        %1190 = vmatprep.subr.bf16.mxu0 0
        %1191 = vmatpush1.bf16.msra.mxu0 %v1172
        %1192 = vmatprep.subr.bf16.mxu0 0
        %1193 = vmatpush1.bf16.msra.mxu0 %v1171
        %1194 = vmatprep.subr.bf16.mxu0 0
        %1195 = vmatpush2.bf16.msra.mxu0 0
        %1196 = vmatprep.subr.bf16.mxu0 0
        %1197 = vmatpush2.bf16.msra.mxu0 0
        %1198 = vmatprep.subr.bf16.mxu0 0
        %1199 = vmatpush2.bf16.msra.mxu0 0
        %1200 = vmatprep.subr.bf16.mxu0 0
        %1201 = vmatpush2.bf16.msra.mxu0 0
        %1202 = vmatprep.subr.bf16.mxu0 0
        %1203 = vmatpush2.bf16.msra.mxu0 0
        %1204 = vmatprep.subr.bf16.mxu0 0
        %1205 = vmatpush2.bf16.msra.mxu0 0
        %1206 = vmatprep.subr.bf16.mxu0 0
        %1207 = vmatpush2.bf16.msra.mxu0 0
        %1208 = vmatprep.subr.bf16.mxu0 0
        %1209 = vmatpush2.bf16.msra.mxu0 0
        %1210 = vmatprep.mubr.bf16.mxu0 0
        %1211 = vmatmul.mubr.bf16.gmra.mxu0 %v1176
        %v1212 = vpop.f32.mrf.mxu0
        %v1213 = vadd.f32 0.0, %v1212
        %v1214 = vpop.f32.mrf.mxu0
        %v1215 = vpop.f32.mrf.mxu0
        %v1216 = vpop.f32.mrf.mxu0
        %1217 = vdwg.mxu0
        %v1218 = vadd.f32 %v1048, %v1103
        %v1219 = vadd.f32 %v1218, %v1158
        %v1220 = vadd.f32 %v1219, %v1213
        %v1221 = vld [vmem:[%s4] sm:$0x1]
        %v1223 = vlaneseq
        %v1224 = vshrl.u32 %v1223, 7
        %v1225 = vsub.s32 0, %v1224
        %v1226 = vrot.slane %v1221, %v1225
        %v1228 = vadd.f32 %v1220, %v1226
        %v1229 = vadd.f32 %v1228, %v554
        %1230 = vadd.xlane.f32.xlu0 %v1229
        %v1231 = vpop.xlane.xlu0 %1230
        %v1232 = vrcp.pop 128.0
        %v1233 = vmul.f32 %v1231, %v1232
        %v1234 = vmul.f32 %v1229, %v1229
        %1235 = vadd.xlane.f32.xlu0 %v1234
        %v1236 = vpop.xlane.xlu0 %1235
        %v1237 = vmul.f32 %v1236, %v1232
        %v1238 = vmul.f32 %v1233, %v1233
        %v1239 = vsub.f32 %v1237, %v1238
        %v1240 = vsub.f32 %v1229, %v1233
        %v1241 = vadd.f32 %v1239, 1e-05
        %v1242 = vrsqrt.pop %v1241
        %v1243 = vmul.f32 %v1240, %v1242
        %v1244 = vld [vmem:[%s5] sm:$0x1]
        %v1246 = vlaneseq
        %v1247 = vshrl.u32 %v1246, 7
        %v1248 = vsub.s32 0, %v1247
        %v1249 = vrot.slane %v1244, %v1248
        %v1251 = vmul.f32 %v1243, %v1249
        %v1252 = vld [vmem:[%s6] sm:$0x1]
        %v1254 = vlaneseq
        %v1255 = vshrl.u32 %v1254, 7
        %v1256 = vsub.s32 0, %v1255
        %v1257 = vrot.slane %v1252, %v1256
        %v1259 = vadd.f32 %v1251, %v1257
        %v1260 = vpack.c.bf16 %v1259, %v1259
        %v1261 = vld [vmem:[#allocation8] sm:$0xff]
        %v1262 = vld [vmem:[#allocation8 + $0x8] sm:$0xff]
        %v1263 = vld [vmem:[#allocation8 + $0x10] sm:$0xff]
        %v1264 = vld [vmem:[#allocation8 + $0x18] sm:$0xff]
        %v1265 = vld [vmem:[#allocation8 + $0x20] sm:$0xff]
        %v1266 = vld [vmem:[#allocation8 + $0x28] sm:$0xff]
        %v1267 = vld [vmem:[#allocation8 + $0x30] sm:$0xff]
        %v1268 = vld [vmem:[#allocation8 + $0x38] sm:$0xff]
        %v1269 = vld [vmem:[#allocation8 + $0x40] sm:$0xff]
        %v1270 = vld [vmem:[#allocation8 + $0x48] sm:$0xff]
        %v1271 = vld [vmem:[#allocation8 + $0x50] sm:$0xff]
        %v1272 = vld [vmem:[#allocation8 + $0x58] sm:$0xff]
        %v1273 = vld [vmem:[#allocation8 + $0x60] sm:$0xff]
        %v1274 = vld [vmem:[#allocation8 + $0x68] sm:$0xff]
        %v1275 = vld [vmem:[#allocation8 + $0x70] sm:$0xff]
        %v1276 = vld [vmem:[#allocation8 + $0x78] sm:$0xff]
        %v1277 = vld [vmem:[#allocation8 + $0x80] sm:$0xff]
        %v1278 = vld [vmem:[#allocation8 + $0x88] sm:$0xff]
        %v1279 = vld [vmem:[#allocation8 + $0x90] sm:$0xff]
        %v1280 = vld [vmem:[#allocation8 + $0x98] sm:$0xff]
        %v1281 = vld [vmem:[#allocation8 + $0xa0] sm:$0xff]
        %v1282 = vld [vmem:[#allocation8 + $0xa8] sm:$0xff]
        %v1283 = vld [vmem:[#allocation8 + $0xb0] sm:$0xff]
        %v1284 = vld [vmem:[#allocation8 + $0xb8] sm:$0xff]
        %v1285 = vld [vmem:[#allocation8 + $0xc0] sm:$0xff]
        %v1286 = vld [vmem:[#allocation8 + $0xc8] sm:$0xff]
        %v1287 = vld [vmem:[#allocation8 + $0xd0] sm:$0xff]
        %v1288 = vld [vmem:[#allocation8 + $0xd8] sm:$0xff]
        %v1289 = vld [vmem:[#allocation8 + $0xe0] sm:$0xff]
        %v1290 = vld [vmem:[#allocation8 + $0xe8] sm:$0xff]
        %v1291 = vld [vmem:[#allocation8 + $0xf0] sm:$0xff]
        %v1292 = vld [vmem:[#allocation8 + $0xf8] sm:$0xff]
        %v1293 = vld [vmem:[%s8] sm:$0xf]
        %v1295 = vlaneseq
        %v1296 = vshrl.u32 %v1295, 7
        %v1297 = vsub.s32 0, %v1296
        %v1298 = vrot.slane %v1293, %v1297
        %v1299 = vlaneseq
        %v1300 = vshrl.u32 %v1299, 7
        %v1301 = vsub.s32 1, %v1300
        %v1302 = vrot.slane %v1293, %v1301
        %v1303 = vlaneseq
        %v1304 = vshrl.u32 %v1303, 7
        %v1305 = vsub.s32 2, %v1304
        %v1306 = vrot.slane %v1293, %v1305
        %v1307 = vlaneseq
        %v1308 = vshrl.u32 %v1307, 7
        %v1309 = vsub.s32 3, %v1308
        %v1310 = vrot.slane %v1293, %v1309
        %v1347 = vunpack.c.l.b16 %v1261
        %v1348 = vunpack.c.h.b16 %v1261
        %v1349 = vunpack.c.l.b16 %v1262
        %v1350 = vunpack.c.h.b16 %v1262
        %v1351 = vunpack.c.l.b16 %v1263
        %v1352 = vunpack.c.h.b16 %v1263
        %v1353 = vunpack.c.l.b16 %v1264
        %v1354 = vunpack.c.h.b16 %v1264
        %v1355 = vunpack.c.l.b16 %v1265
        %v1356 = vunpack.c.h.b16 %v1265
        %v1357 = vunpack.c.l.b16 %v1266
        %v1358 = vunpack.c.h.b16 %v1266
        %v1359 = vunpack.c.l.b16 %v1267
        %v1360 = vunpack.c.h.b16 %v1267
        %v1361 = vunpack.c.l.b16 %v1268
        %v1362 = vunpack.c.h.b16 %v1268
        %v1363 = vunpack.c.l.b16 %v1269
        %v1364 = vunpack.c.h.b16 %v1269
        %v1365 = vunpack.c.l.b16 %v1270
        %v1366 = vunpack.c.h.b16 %v1270
        %v1367 = vunpack.c.l.b16 %v1271
        %v1368 = vunpack.c.h.b16 %v1271
        %v1369 = vunpack.c.l.b16 %v1272
        %v1370 = vunpack.c.h.b16 %v1272
        %v1371 = vunpack.c.l.b16 %v1273
        %v1372 = vunpack.c.h.b16 %v1273
        %v1373 = vunpack.c.l.b16 %v1274
        %v1374 = vunpack.c.h.b16 %v1274
        %v1375 = vunpack.c.l.b16 %v1275
        %v1376 = vunpack.c.h.b16 %v1275
        %v1377 = vunpack.c.l.b16 %v1276
        %v1378 = vunpack.c.h.b16 %v1276
        %v1379 = vunpack.c.l.b16 %v1277
        %v1380 = vunpack.c.h.b16 %v1277
        %v1381 = vunpack.c.l.b16 %v1278
        %v1382 = vunpack.c.h.b16 %v1278
        %v1383 = vunpack.c.l.b16 %v1279
        %v1384 = vunpack.c.h.b16 %v1279
        %v1385 = vunpack.c.l.b16 %v1280
        %v1386 = vunpack.c.h.b16 %v1280
        %v1387 = vunpack.c.l.b16 %v1281
        %v1388 = vunpack.c.h.b16 %v1281
        %v1389 = vunpack.c.l.b16 %v1282
        %v1390 = vunpack.c.h.b16 %v1282
        %v1391 = vunpack.c.l.b16 %v1283
        %v1392 = vunpack.c.h.b16 %v1283
        %v1393 = vunpack.c.l.b16 %v1284
        %v1394 = vunpack.c.h.b16 %v1284
        %v1395 = vunpack.c.l.b16 %v1285
        %v1396 = vunpack.c.h.b16 %v1285
        %v1397 = vunpack.c.l.b16 %v1286
        %v1398 = vunpack.c.h.b16 %v1286
        %v1399 = vunpack.c.l.b16 %v1287
        %v1400 = vunpack.c.h.b16 %v1287
        %v1401 = vunpack.c.l.b16 %v1288
        %v1402 = vunpack.c.h.b16 %v1288
        %v1403 = vunpack.c.l.b16 %v1289
        %v1404 = vunpack.c.h.b16 %v1289
        %v1405 = vunpack.c.l.b16 %v1290
        %v1406 = vunpack.c.h.b16 %v1290
        %v1407 = vunpack.c.l.b16 %v1291
        %v1408 = vunpack.c.h.b16 %v1291
        %v1409 = vunpack.c.l.b16 %v1292
        %v1410 = vunpack.c.h.b16 %v1292
        %v1411 = vpack.c.b16 %v1351, %v1347
        %v1412 = vpack.c.b16 %v1352, %v1348
        %v1413 = vpack.c.b16 %v1353, %v1349
        %v1414 = vpack.c.b16 %v1354, %v1350
        %v1415 = vpack.c.b16 %v1359, %v1355
        %v1416 = vpack.c.b16 %v1360, %v1356
        %v1417 = vpack.c.b16 %v1361, %v1357
        %v1418 = vpack.c.b16 %v1362, %v1358
        %v1419 = vpack.c.b16 %v1367, %v1363
        %v1420 = vpack.c.b16 %v1368, %v1364
        %v1421 = vpack.c.b16 %v1369, %v1365
        %v1422 = vpack.c.b16 %v1370, %v1366
        %v1423 = vpack.c.b16 %v1375, %v1371
        %v1424 = vpack.c.b16 %v1376, %v1372
        %v1425 = vpack.c.b16 %v1377, %v1373
        %v1426 = vpack.c.b16 %v1378, %v1374
        %v1427 = vpack.c.b16 %v1383, %v1379
        %v1428 = vpack.c.b16 %v1384, %v1380
        %v1429 = vpack.c.b16 %v1385, %v1381
        %v1430 = vpack.c.b16 %v1386, %v1382
        %v1431 = vpack.c.b16 %v1391, %v1387
        %v1432 = vpack.c.b16 %v1392, %v1388
        %v1433 = vpack.c.b16 %v1393, %v1389
        %v1434 = vpack.c.b16 %v1394, %v1390
        %v1435 = vpack.c.b16 %v1399, %v1395
        %v1436 = vpack.c.b16 %v1400, %v1396
        %v1437 = vpack.c.b16 %v1401, %v1397
        %v1438 = vpack.c.b16 %v1402, %v1398
        %v1439 = vpack.c.b16 %v1407, %v1403
        %v1440 = vpack.c.b16 %v1408, %v1404
        %v1441 = vpack.c.b16 %v1409, %v1405
        %v1442 = vpack.c.b16 %v1410, %v1406
        %1475 = vmatprep.subr.bf16.mxu0 %v1440
        %1476 = vmatpush1.bf16.msra.mxu0 %v1439
        %1477 = vmatprep.subr.bf16.mxu0 %v1436
        %1478 = vmatpush1.bf16.msra.mxu0 %v1435
        %1479 = vmatprep.subr.bf16.mxu0 %v1432
        %1480 = vmatpush1.bf16.msra.mxu0 %v1431
        %1481 = vmatprep.subr.bf16.mxu0 %v1428
        %1482 = vmatpush1.bf16.msra.mxu0 %v1427
        %1483 = vmatprep.subr.bf16.mxu0 %v1424
        %1484 = vmatpush1.bf16.msra.mxu0 %v1423
        %1485 = vmatprep.subr.bf16.mxu0 %v1420
        %1486 = vmatpush1.bf16.msra.mxu0 %v1419
        %1487 = vmatprep.subr.bf16.mxu0 %v1416
        %1488 = vmatpush1.bf16.msra.mxu0 %v1415
        %1489 = vmatprep.subr.bf16.mxu0 %v1412
        %1490 = vmatpush1.bf16.msra.mxu0 %v1411
        %1491 = vmatprep.subr.bf16.mxu0 0
        %1492 = vmatpush2.bf16.msra.mxu0 0
        %1493 = vmatprep.subr.bf16.mxu0 0
        %1494 = vmatpush2.bf16.msra.mxu0 0
        %1495 = vmatprep.subr.bf16.mxu0 0
        %1496 = vmatpush2.bf16.msra.mxu0 0
        %1497 = vmatprep.subr.bf16.mxu0 0
        %1498 = vmatpush2.bf16.msra.mxu0 0
        %1499 = vmatprep.subr.bf16.mxu0 0
        %1500 = vmatpush2.bf16.msra.mxu0 0
        %1501 = vmatprep.subr.bf16.mxu0 0
        %1502 = vmatpush2.bf16.msra.mxu0 0
        %1503 = vmatprep.subr.bf16.mxu0 0
        %1504 = vmatpush2.bf16.msra.mxu0 0
        %1505 = vmatprep.subr.bf16.mxu0 0
        %1506 = vmatpush2.bf16.msra.mxu0 0
        %1507 = vmatprep.mubr.bf16.mxu0 0
        %1508 = vmatmul.mubr.bf16.gmra.mxu0 %v1260
        %v1509 = vpop.f32.mrf.mxu0
        %v1510 = vadd.f32 %v1298, %v1509
        %v1511 = vpop.f32.mrf.mxu0
        %v1512 = vadd.f32 %v1302, %v1511
        %v1513 = vpop.f32.mrf.mxu0
        %v1514 = vpop.f32.mrf.mxu0
        %1515 = vdwg.mxu0
        %1516 = vmatprep.subr.bf16.mxu0 %v1442
        %1517 = vmatpush1.bf16.msra.mxu0 %v1441
        %1518 = vmatprep.subr.bf16.mxu0 %v1438
        %1519 = vmatpush1.bf16.msra.mxu0 %v1437
        %1520 = vmatprep.subr.bf16.mxu0 %v1434
        %1521 = vmatpush1.bf16.msra.mxu0 %v1433
        %1522 = vmatprep.subr.bf16.mxu0 %v1430
        %1523 = vmatpush1.bf16.msra.mxu0 %v1429
        %1524 = vmatprep.subr.bf16.mxu0 %v1426
        %1525 = vmatpush1.bf16.msra.mxu0 %v1425
        %1526 = vmatprep.subr.bf16.mxu0 %v1422
        %1527 = vmatpush1.bf16.msra.mxu0 %v1421
        %1528 = vmatprep.subr.bf16.mxu0 %v1418
        %1529 = vmatpush1.bf16.msra.mxu0 %v1417
        %1530 = vmatprep.subr.bf16.mxu0 %v1414
        %1531 = vmatpush1.bf16.msra.mxu0 %v1413
        %1532 = vmatprep.subr.bf16.mxu0 0
        %1533 = vmatpush2.bf16.msra.mxu0 0
        %1534 = vmatprep.subr.bf16.mxu0 0
        %1535 = vmatpush2.bf16.msra.mxu0 0
        %1536 = vmatprep.subr.bf16.mxu0 0
        %1537 = vmatpush2.bf16.msra.mxu0 0
        %1538 = vmatprep.subr.bf16.mxu0 0
        %1539 = vmatpush2.bf16.msra.mxu0 0
        %1540 = vmatprep.subr.bf16.mxu0 0
        %1541 = vmatpush2.bf16.msra.mxu0 0
        %1542 = vmatprep.subr.bf16.mxu0 0
        %1543 = vmatpush2.bf16.msra.mxu0 0
        %1544 = vmatprep.subr.bf16.mxu0 0
        %1545 = vmatpush2.bf16.msra.mxu0 0
        %1546 = vmatprep.subr.bf16.mxu0 0
        %1547 = vmatpush2.bf16.msra.mxu0 0
        %1548 = vmatprep.mubr.bf16.mxu0 0
        %1549 = vmatmul.mubr.bf16.gmra.mxu0 %v1260
        %v1550 = vpop.f32.mrf.mxu0
        %v1551 = vadd.f32 %v1306, %v1550
        %v1552 = vpop.f32.mrf.mxu0
        %v1553 = vadd.f32 %v1310, %v1552
        %v1554 = vpop.f32.mrf.mxu0
        %v1555 = vpop.f32.mrf.mxu0
        %1556 = vdwg.mxu0
        %v1557 = vmax.f32 %v1510, 0.0
        %v1558 = vmax.f32 %v1512, 0.0
        %v1559 = vmax.f32 %v1551, 0.0
        %v1560 = vmax.f32 %v1553, 0.0
        %v1561 = vpack.c.bf16 %v1557, %v1557
        %v1562 = vpack.c.bf16 %v1558, %v1558
        %v1563 = vpack.c.bf16 %v1559, %v1559
        %v1564 = vpack.c.bf16 %v1560, %v1560
        %v1565 = vld [vmem:[#allocation10] sm:$0xf]
        %v1566 = vld [vmem:[#allocation10 + $0x4] sm:$0xf]
        %v1567 = vld [vmem:[#allocation10 + $0x8] sm:$0xf]
        %v1568 = vld [vmem:[#allocation10 + $0xc] sm:$0xf]
        %v1569 = vld [vmem:[#allocation10 + $0x10] sm:$0xf]
        %v1570 = vld [vmem:[#allocation10 + $0x14] sm:$0xf]
        %v1571 = vld [vmem:[#allocation10 + $0x18] sm:$0xf]
        %v1572 = vld [vmem:[#allocation10 + $0x1c] sm:$0xf]
        %v1573 = vld [vmem:[#allocation10 + $0x20] sm:$0xf]
        %v1574 = vld [vmem:[#allocation10 + $0x24] sm:$0xf]
        %v1575 = vld [vmem:[#allocation10 + $0x28] sm:$0xf]
        %v1576 = vld [vmem:[#allocation10 + $0x2c] sm:$0xf]
        %v1577 = vld [vmem:[#allocation10 + $0x30] sm:$0xf]
        %v1578 = vld [vmem:[#allocation10 + $0x34] sm:$0xf]
        %v1579 = vld [vmem:[#allocation10 + $0x38] sm:$0xf]
        %v1580 = vld [vmem:[#allocation10 + $0x3c] sm:$0xf]
        %v1581 = vld [vmem:[#allocation10 + $0x40] sm:$0xf]
        %v1582 = vld [vmem:[#allocation10 + $0x44] sm:$0xf]
        %v1583 = vld [vmem:[#allocation10 + $0x48] sm:$0xf]
        %v1584 = vld [vmem:[#allocation10 + $0x4c] sm:$0xf]
        %v1585 = vld [vmem:[#allocation10 + $0x50] sm:$0xf]
        %v1586 = vld [vmem:[#allocation10 + $0x54] sm:$0xf]
        %v1587 = vld [vmem:[#allocation10 + $0x58] sm:$0xf]
        %v1588 = vld [vmem:[#allocation10 + $0x5c] sm:$0xf]
        %v1589 = vld [vmem:[#allocation10 + $0x60] sm:$0xf]
        %v1590 = vld [vmem:[#allocation10 + $0x64] sm:$0xf]
        %v1591 = vld [vmem:[#allocation10 + $0x68] sm:$0xf]
        %v1592 = vld [vmem:[#allocation10 + $0x6c] sm:$0xf]
        %v1593 = vld [vmem:[#allocation10 + $0x70] sm:$0xf]
        %v1594 = vld [vmem:[#allocation10 + $0x74] sm:$0xf]
        %v1595 = vld [vmem:[#allocation10 + $0x78] sm:$0xf]
        %v1596 = vld [vmem:[#allocation10 + $0x7c] sm:$0xf]
        %v1597 = vld [vmem:[#allocation10 + $0x80] sm:$0xf]
        %v1598 = vld [vmem:[#allocation10 + $0x84] sm:$0xf]
        %v1599 = vld [vmem:[#allocation10 + $0x88] sm:$0xf]
        %v1600 = vld [vmem:[#allocation10 + $0x8c] sm:$0xf]
        %v1601 = vld [vmem:[#allocation10 + $0x90] sm:$0xf]
        %v1602 = vld [vmem:[#allocation10 + $0x94] sm:$0xf]
        %v1603 = vld [vmem:[#allocation10 + $0x98] sm:$0xf]
        %v1604 = vld [vmem:[#allocation10 + $0x9c] sm:$0xf]
        %v1605 = vld [vmem:[#allocation10 + $0xa0] sm:$0xf]
        %v1606 = vld [vmem:[#allocation10 + $0xa4] sm:$0xf]
        %v1607 = vld [vmem:[#allocation10 + $0xa8] sm:$0xf]
        %v1608 = vld [vmem:[#allocation10 + $0xac] sm:$0xf]
        %v1609 = vld [vmem:[#allocation10 + $0xb0] sm:$0xf]
        %v1610 = vld [vmem:[#allocation10 + $0xb4] sm:$0xf]
        %v1611 = vld [vmem:[#allocation10 + $0xb8] sm:$0xf]
        %v1612 = vld [vmem:[#allocation10 + $0xbc] sm:$0xf]
        %v1613 = vld [vmem:[#allocation10 + $0xc0] sm:$0xf]
        %v1614 = vld [vmem:[#allocation10 + $0xc4] sm:$0xf]
        %v1615 = vld [vmem:[#allocation10 + $0xc8] sm:$0xf]
        %v1616 = vld [vmem:[#allocation10 + $0xcc] sm:$0xf]
        %v1617 = vld [vmem:[#allocation10 + $0xd0] sm:$0xf]
        %v1618 = vld [vmem:[#allocation10 + $0xd4] sm:$0xf]
        %v1619 = vld [vmem:[#allocation10 + $0xd8] sm:$0xf]
        %v1620 = vld [vmem:[#allocation10 + $0xdc] sm:$0xf]
        %v1621 = vld [vmem:[#allocation10 + $0xe0] sm:$0xf]
        %v1622 = vld [vmem:[#allocation10 + $0xe4] sm:$0xf]
        %v1623 = vld [vmem:[#allocation10 + $0xe8] sm:$0xf]
        %v1624 = vld [vmem:[#allocation10 + $0xec] sm:$0xf]
        %v1625 = vld [vmem:[#allocation10 + $0xf0] sm:$0xf]
        %v1626 = vld [vmem:[#allocation10 + $0xf4] sm:$0xf]
        %v1627 = vld [vmem:[#allocation10 + $0xf8] sm:$0xf]
        %v1628 = vld [vmem:[#allocation10 + $0xfc] sm:$0xf]
        %v1629 = vld [vmem:[%s10] sm:$0x1]
        %v1631 = vlaneseq
        %v1632 = vshrl.u32 %v1631, 7
        %v1633 = vsub.s32 0, %v1632
        %v1634 = vrot.slane %v1629, %v1633
        %v1700 = vunpack.c.l.b16 %v1565
        %v1701 = vunpack.c.l.b16 %v1566
        %v1702 = vunpack.c.l.b16 %v1567
        %v1703 = vunpack.c.l.b16 %v1568
        %v1704 = vunpack.c.l.b16 %v1569
        %v1705 = vunpack.c.l.b16 %v1570
        %v1706 = vunpack.c.l.b16 %v1571
        %v1707 = vunpack.c.l.b16 %v1572
        %v1708 = vunpack.c.l.b16 %v1573
        %v1709 = vunpack.c.l.b16 %v1574
        %v1710 = vunpack.c.l.b16 %v1575
        %v1711 = vunpack.c.l.b16 %v1576
        %v1712 = vunpack.c.l.b16 %v1577
        %v1713 = vunpack.c.l.b16 %v1578
        %v1714 = vunpack.c.l.b16 %v1579
        %v1715 = vunpack.c.l.b16 %v1580
        %v1716 = vunpack.c.l.b16 %v1581
        %v1717 = vunpack.c.l.b16 %v1582
        %v1718 = vunpack.c.l.b16 %v1583
        %v1719 = vunpack.c.l.b16 %v1584
        %v1720 = vunpack.c.l.b16 %v1585
        %v1721 = vunpack.c.l.b16 %v1586
        %v1722 = vunpack.c.l.b16 %v1587
        %v1723 = vunpack.c.l.b16 %v1588
        %v1724 = vunpack.c.l.b16 %v1589
        %v1725 = vunpack.c.l.b16 %v1590
        %v1726 = vunpack.c.l.b16 %v1591
        %v1727 = vunpack.c.l.b16 %v1592
        %v1728 = vunpack.c.l.b16 %v1593
        %v1729 = vunpack.c.l.b16 %v1594
        %v1730 = vunpack.c.l.b16 %v1595
        %v1731 = vunpack.c.l.b16 %v1596
        %v1732 = vunpack.c.l.b16 %v1597
        %v1733 = vunpack.c.l.b16 %v1598
        %v1734 = vunpack.c.l.b16 %v1599
        %v1735 = vunpack.c.l.b16 %v1600
        %v1736 = vunpack.c.l.b16 %v1601
        %v1737 = vunpack.c.l.b16 %v1602
        %v1738 = vunpack.c.l.b16 %v1603
        %v1739 = vunpack.c.l.b16 %v1604
        %v1740 = vunpack.c.l.b16 %v1605
        %v1741 = vunpack.c.l.b16 %v1606
        %v1742 = vunpack.c.l.b16 %v1607
        %v1743 = vunpack.c.l.b16 %v1608
        %v1744 = vunpack.c.l.b16 %v1609
        %v1745 = vunpack.c.l.b16 %v1610
        %v1746 = vunpack.c.l.b16 %v1611
        %v1747 = vunpack.c.l.b16 %v1612
        %v1748 = vunpack.c.l.b16 %v1613
        %v1749 = vunpack.c.l.b16 %v1614
        %v1750 = vunpack.c.l.b16 %v1615
        %v1751 = vunpack.c.l.b16 %v1616
        %v1752 = vunpack.c.l.b16 %v1617
        %v1753 = vunpack.c.l.b16 %v1618
        %v1754 = vunpack.c.l.b16 %v1619
        %v1755 = vunpack.c.l.b16 %v1620
        %v1756 = vunpack.c.l.b16 %v1621
        %v1757 = vunpack.c.l.b16 %v1622
        %v1758 = vunpack.c.l.b16 %v1623
        %v1759 = vunpack.c.l.b16 %v1624
        %v1760 = vunpack.c.l.b16 %v1625
        %v1761 = vunpack.c.l.b16 %v1626
        %v1762 = vunpack.c.l.b16 %v1627
        %v1763 = vunpack.c.l.b16 %v1628
        %v1764 = vpack.c.b16 %v1701, %v1700
        %v1765 = vpack.c.b16 %v1703, %v1702
        %v1766 = vpack.c.b16 %v1705, %v1704
        %v1767 = vpack.c.b16 %v1707, %v1706
        %v1768 = vpack.c.b16 %v1709, %v1708
        %v1769 = vpack.c.b16 %v1711, %v1710
        %v1770 = vpack.c.b16 %v1713, %v1712
        %v1771 = vpack.c.b16 %v1715, %v1714
        %v1772 = vpack.c.b16 %v1717, %v1716
        %v1773 = vpack.c.b16 %v1719, %v1718
        %v1774 = vpack.c.b16 %v1721, %v1720
        %v1775 = vpack.c.b16 %v1723, %v1722
        %v1776 = vpack.c.b16 %v1725, %v1724
        %v1777 = vpack.c.b16 %v1727, %v1726
        %v1778 = vpack.c.b16 %v1729, %v1728
        %v1779 = vpack.c.b16 %v1731, %v1730
        %v1780 = vpack.c.b16 %v1733, %v1732
        %v1781 = vpack.c.b16 %v1735, %v1734
        %v1782 = vpack.c.b16 %v1737, %v1736
        %v1783 = vpack.c.b16 %v1739, %v1738
        %v1784 = vpack.c.b16 %v1741, %v1740
        %v1785 = vpack.c.b16 %v1743, %v1742
        %v1786 = vpack.c.b16 %v1745, %v1744
        %v1787 = vpack.c.b16 %v1747, %v1746
        %v1788 = vpack.c.b16 %v1749, %v1748
        %v1789 = vpack.c.b16 %v1751, %v1750
        %v1790 = vpack.c.b16 %v1753, %v1752
        %v1791 = vpack.c.b16 %v1755, %v1754
        %v1792 = vpack.c.b16 %v1757, %v1756
        %v1793 = vpack.c.b16 %v1759, %v1758
        %v1794 = vpack.c.b16 %v1761, %v1760
        %v1795 = vpack.c.b16 %v1763, %v1762
        %1828 = vmatprep.subr.bf16.mxu0 0
        %1829 = vmatpush1.bf16.msra.mxu0 %v1771
        %1830 = vmatprep.subr.bf16.mxu0 0
        %1831 = vmatpush1.bf16.msra.mxu0 %v1770
        %1832 = vmatprep.subr.bf16.mxu0 0
        %1833 = vmatpush1.bf16.msra.mxu0 %v1769
        %1834 = vmatprep.subr.bf16.mxu0 0
        %1835 = vmatpush1.bf16.msra.mxu0 %v1768
        %1836 = vmatprep.subr.bf16.mxu0 0
        %1837 = vmatpush1.bf16.msra.mxu0 %v1767
        %1838 = vmatprep.subr.bf16.mxu0 0
        %1839 = vmatpush1.bf16.msra.mxu0 %v1766
        %1840 = vmatprep.subr.bf16.mxu0 0
        %1841 = vmatpush1.bf16.msra.mxu0 %v1765
        %1842 = vmatprep.subr.bf16.mxu0 0
        %1843 = vmatpush1.bf16.msra.mxu0 %v1764
        %1844 = vmatprep.subr.bf16.mxu0 0
        %1845 = vmatpush2.bf16.msra.mxu0 %v1779
        %1846 = vmatprep.subr.bf16.mxu0 0
        %1847 = vmatpush2.bf16.msra.mxu0 %v1778
        %1848 = vmatprep.subr.bf16.mxu0 0
        %1849 = vmatpush2.bf16.msra.mxu0 %v1777
        %1850 = vmatprep.subr.bf16.mxu0 0
        %1851 = vmatpush2.bf16.msra.mxu0 %v1776
        %1852 = vmatprep.subr.bf16.mxu0 0
        %1853 = vmatpush2.bf16.msra.mxu0 %v1775
        %1854 = vmatprep.subr.bf16.mxu0 0
        %1855 = vmatpush2.bf16.msra.mxu0 %v1774
        %1856 = vmatprep.subr.bf16.mxu0 0
        %1857 = vmatpush2.bf16.msra.mxu0 %v1773
        %1858 = vmatprep.subr.bf16.mxu0 0
        %1859 = vmatpush2.bf16.msra.mxu0 %v1772
        %1860 = vmatprep.mubr.bf16.mxu0 %v1562
        %1861 = vmatmul.mubr.bf16.gmra.mxu0 %v1561
        %v1862 = vpop.f32.mrf.mxu0
        %v1863 = vadd.f32 %v1634, %v1862
        %v1864 = vpop.f32.mrf.mxu0
        %v1865 = vpop.f32.mrf.mxu0
        %v1866 = vpop.f32.mrf.mxu0
        %1867 = vdwg.mxu0
        %1868 = vmatprep.subr.bf16.mxu0 0
        %1869 = vmatpush1.bf16.msra.mxu0 %v1787
        %1870 = vmatprep.subr.bf16.mxu0 0
        %1871 = vmatpush1.bf16.msra.mxu0 %v1786
        %1872 = vmatprep.subr.bf16.mxu0 0
        %1873 = vmatpush1.bf16.msra.mxu0 %v1785
        %1874 = vmatprep.subr.bf16.mxu0 0
        %1875 = vmatpush1.bf16.msra.mxu0 %v1784
        %1876 = vmatprep.subr.bf16.mxu0 0
        %1877 = vmatpush1.bf16.msra.mxu0 %v1783
        %1878 = vmatprep.subr.bf16.mxu0 0
        %1879 = vmatpush1.bf16.msra.mxu0 %v1782
        %1880 = vmatprep.subr.bf16.mxu0 0
        %1881 = vmatpush1.bf16.msra.mxu0 %v1781
        %1882 = vmatprep.subr.bf16.mxu0 0
        %1883 = vmatpush1.bf16.msra.mxu0 %v1780
        %1884 = vmatprep.subr.bf16.mxu0 0
        %1885 = vmatpush2.bf16.msra.mxu0 %v1795
        %1886 = vmatprep.subr.bf16.mxu0 0
        %1887 = vmatpush2.bf16.msra.mxu0 %v1794
        %1888 = vmatprep.subr.bf16.mxu0 0
        %1889 = vmatpush2.bf16.msra.mxu0 %v1793
        %1890 = vmatprep.subr.bf16.mxu0 0
        %1891 = vmatpush2.bf16.msra.mxu0 %v1792
        %1892 = vmatprep.subr.bf16.mxu0 0
        %1893 = vmatpush2.bf16.msra.mxu0 %v1791
        %1894 = vmatprep.subr.bf16.mxu0 0
        %1895 = vmatpush2.bf16.msra.mxu0 %v1790
        %1896 = vmatprep.subr.bf16.mxu0 0
        %1897 = vmatpush2.bf16.msra.mxu0 %v1789
        %1898 = vmatprep.subr.bf16.mxu0 0
        %1899 = vmatpush2.bf16.msra.mxu0 %v1788
        %1900 = vmatprep.mubr.bf16.mxu0 %v1564
        %1901 = vmatmul.mubr.bf16.gmra.mxu0 %v1563
        %v1902 = vpop.f32.mrf.mxu0
        %v1903 = vadd.f32 %v1863, %v1902
        %v1904 = vpop.f32.mrf.mxu0
        %v1905 = vpop.f32.mrf.mxu0
        %v1906 = vpop.f32.mrf.mxu0
        %1907 = vdwg.mxu0
        %v1908 = vadd.f32 %v1903, %v1259
        %1909 = vadd.xlane.f32.xlu0 %v1908
        %v1910 = vpop.xlane.xlu0 %1909
        %v1911 = vmul.f32 %v1910, %v1232
        %v1912 = vmul.f32 %v1908, %v1908
        %1913 = vadd.xlane.f32.xlu0 %v1912
        %v1914 = vpop.xlane.xlu0 %1913
        %v1915 = vmul.f32 %v1914, %v1232
        %v1916 = vmul.f32 %v1911, %v1911
        %v1917 = vsub.f32 %v1915, %v1916
        %v1918 = vsub.f32 %v1908, %v1911
        %v1919 = vadd.f32 %v1917, 1e-05
        %v1920 = vrsqrt.pop %v1919
        %v1921 = vmul.f32 %v1918, %v1920
        %v1922 = vld [vmem:[%s11] sm:$0x1]
        %v1924 = vlaneseq
        %v1925 = vshrl.u32 %v1924, 7
        %v1926 = vsub.s32 0, %v1925
        %v1927 = vrot.slane %v1922, %v1926
        %v1929 = vmul.f32 %v1921, %v1927
        %v1930 = vld [vmem:[%s12] sm:$0x1]
        %v1932 = vlaneseq
        %v1933 = vshrl.u32 %v1932, 7
        %v1934 = vsub.s32 0, %v1933
        %v1935 = vrot.slane %v1930, %v1934
        %v1937 = vadd.f32 %v1929, %v1935
        %1938 = vst [vmem:[%s549] sm:$0xff] %v1937
        %s1939 = sand.u32 %s330, 1
        %s1940 = scalar_lea.sflag [#allocation4], %s1939
        %s1941 = sand.u32 %s330, 1
        %s1942 = smul.addr %s1941, 8
        %s1943 = scalar_lea.vmem [#allocation11], %s1942
        // Predicated region
        $region93: #{tpu_custom_call.1} parent=71 // pred_check
          %p1944 = pneg %p340
        $region94: #{tpu_custom_call.1} parent=71 // pred_check_branch
          %1946 = sbr.rel (%p1944) target = $region96
        $region95: #{tpu_custom_call.1} parent=71 // pred_region
          %s1948 = ssub.s32 128, 128
          %1949 = vsyncadd %s1940, %s1948
          %s1950 = smul.addr %s34, 128
          %s1951 = scalar_lea.hbm %s13, %s1950
          %s1953 = sshll.u32 %s1943, 4
          %s1954 = int_to_ptr.vmem [resolvable:$true] %s1953
          %1956 = dma.vmem_to_hbm [thread:$0]  %s1954, 128, %s1951, %s1940
        $region96: #{tpu_custom_call.1} parent=71 // pred_fallthru
          _
      $region72: #{tpu_custom_call.1} parent=5 // pred_fallthru
        _
      %p1957 = scmp.le.s32.totalorder 2, %s29
      // Predicated region
      $region97: #{tpu_custom_call.1} parent=5 // pred_check
        %p1958 = pneg %p1957
      $region98: #{tpu_custom_call.1} parent=5 // pred_check_branch
        %1960 = sbr.rel (%p1958) target = $region100
      $region99: #{tpu_custom_call.1} parent=5 // pred_region
        %s1961 = ssub.s32 %s29, 2
        // Predicated region
        $region101: #{tpu_custom_call.1} parent=99 // pred_check
          %p1962 = pneg %p346
        $region102: #{tpu_custom_call.1} parent=99 // pred_check_branch
          %1964 = sbr.rel (%p1962) target = $region104
        $region103: #{tpu_custom_call.1} parent=99 // pred_region
          %s1965 = sand.u32 %s331, 1
          %s1966 = scalar_lea.sflag [#allocation4], %s1965
          %s1967 = sand.u32 %s331, 1
          %s1968 = smul.addr %s1967, 8
          %s1969 = scalar_lea.vmem [#allocation11], %s1968
          %1970 = dma.done %s1966, 128
        $region104: #{tpu_custom_call.1} parent=99 // pred_fallthru
          _
      $region100: #{tpu_custom_call.1} parent=5 // pred_fallthru
        _
    $region6: #{tpu_custom_call.1} parent=1 // loop_footer
      %s33 = sadd.s32 1, %s29
    $region7: #{tpu_custom_call.1} parent=1 // loop_footer_branch
      %28 = sbr.rel target = $region3
    $region8: #{tpu_custom_call.1} parent=1 // loop_exit
      _
    %1971 = vsyncpa [#allocation3], 1
    %s1972 = scalar_lea.sflag [#allocation3], 1
    %1973 = vsyncpa %s1972, 1
    %1974 = vsyncpa [#allocation6], 1
    %s1975 = scalar_lea.sflag [#allocation6], 1
    %1976 = vsyncpa %s1975, 1
    %1977 = vsyncpa [#allocation9], 1
    %1978 = vsyncpa [#allocation4], 1
    %s1979 = scalar_lea.sflag [#allocation4], 1
    %1980 = vsyncpa %s1979, 1

</llo_original>
